<compile_context>
chip_gen: v7x
topology: tpu7x:2x2x1
jax: 0.10.0
libtpu: 0.0.40
codegen_flags: <defaults>
</compile_context>

<pallas_src>
import functools
import math

import jax
import jax.numpy as jnp
from jax import lax
from jax.experimental import pallas as pl
from jax.experimental.pallas import tpu as pltpu


# --------------------------------------------------------------------------
# Fused Pallas kernel: all single-domain + cross-domain layers in one body
# --------------------------------------------------------------------------
def _ii_hgcn_fused_kernel(
    # embedding tables (f32)
    ua_ref, ia_ref, ub_ref, ib_ref,
    # block-diag packed adjacency (bf16) and hypergraph incidence (bf16)
    conv_a_ref, conv_b_ref, hga_ref, hgb_ref,
    # stacked per-layer parameters (leading axis = layer)
    wa_t_ref, wb_t_ref,          # bf16, already W^T
    ba_ref, bb_ref,              # f32 (L, 1, E)
    ewau_ref, ewbu_ref, ewai_ref, ewbi_ref,   # f32 element-wise gates
    # outputs: per-layer embeddings, shape (L+1, N, E) each
    pua_ref, pia_ref, pub_ref, pib_ref,
    *, num_layers, n_ua, n_ub,
):
    f32 = jnp.float32
    bf16 = jnp.bfloat16

    def mm(a_bf, b_bf):
        # bf16 MXU inputs, f32 accumulation.
        return jnp.dot(a_bf, b_bf, preferred_element_type=f32)

    # Hoist loop-invariant VMEM loads out of the statically-unrolled loop.
    conv_a = conv_a_ref[...]     # (n_ua+n_ia, n_ua+n_ia) bf16, block-diag
    conv_b = conv_b_ref[...]     # (n_ub+n_ib, n_ub+n_ib) bf16, block-diag
    hga = hga_ref[...]           # (n_ia, n_ib) bf16
    hgb = hgb_ref[...]           # (n_ib, n_ia) bf16

    Mua = ua_ref[...]
    Mia = ia_ref[...]
    Mub = ub_ref[...]
    Mib = ib_ref[...]

    # Layer-0 entries of the concatenation are the raw embeddings.
    pua_ref[0] = Mua
    pia_ref[0] = Mia
    pub_ref[0] = Mub
    pib_ref[0] = Mib

    for i in range(num_layers):
        if i != 0:
            wa_t = wa_t_ref[i]   # (E, E) bf16 (pre-transposed in wrapper)
            wb_t = wb_t_ref[i]
            ba = ba_ref[i]       # (1, E) f32
            bb = bb_ref[i]

            # Row-stack users and items per domain; one conv matmul (block
            # diag) and one shared-weight Linear matmul per domain.  Cast to
            # bf16 once per stacked tensor (hoisted cast).
            xa = jnp.concatenate([Mua, Mia], axis=0).astype(bf16)
            xb = jnp.concatenate([Mub, Mib], axis=0).astype(bf16)
            ma = mm(conv_a, xa)                              # A @ X   (f32)
            mb = mm(conv_b, xb)
            pa = jnp.maximum(mm(ma.astype(bf16), wa_t) + ba + ma, 0.0)
            pb = jnp.maximum(mm(mb.astype(bf16), wb_t) + bb + mb, 0.0)
            Mua, Mia = pa[:n_ua], pa[n_ua:]
            Mub, Mib = pb[:n_ub], pb[n_ub:]

        wau = ewau_ref[i]
        wbu = ewbu_ref[i]
        wai = ewai_ref[i]
        wbi = ewbi_ref[i]

        # Cross-domain item transfer; hoisted bf16 casts of the activations.
        mia_bf = Mia.astype(bf16)
        mib_bf = Mib.astype(bf16)
        mia_from_b = jnp.maximum(mm(hga, mib_bf), 0.0)
        mib_from_a = jnp.maximum(mm(hgb, mia_bf), 0.0)

        # Gating in FMA form: x*w + y*(1-w) == y + w*(x - y).
        Mua_i = Mub + wau * (Mua - Mub)
        Mub_i = Mua + wbu * (Mub - Mua)
        Mia_i = mia_from_b + wai * (Mia - mia_from_b)
        Mib_i = mib_from_a + wbi * (Mib - mib_from_a)

        # Store each layer's result immediately (no list accumulation,
        # no in-kernel lane-axis concat).
        pua_ref[i + 1] = Mua_i
        pub_ref[i + 1] = Mub_i
        pia_ref[i + 1] = Mia_i
        pib_ref[i + 1] = Mib_i

        Mua, Mia, Mub, Mib = Mua_i, Mia_i, Mub_i, Mib_i


# --------------------------------------------------------------------------
# Scoring head (plain JAX; trivial for XLA).  cosine over the (layer, E)
# feature axes of the (L+1, S, E) gathered slabs == cosine over the
# torch.cat([...], dim=1) concatenation.  rsqrt goes to the EUP.
# --------------------------------------------------------------------------
def _cosine_clamped(u, v, axes):
    eps = 1e-8
    dot = jnp.sum(u * v, axis=axes)
    nu2 = jnp.sum(u * u, axis=axes)
    nv2 = jnp.sum(v * v, axis=axes)
    inv = (lax.rsqrt(jnp.maximum(nu2, eps * eps)) *
           lax.rsqrt(jnp.maximum(nv2, eps * eps)))
    return jnp.clip(dot * inv, 0.0, 1.0)


def _block_diag2(a, b):
    n, m = a.shape[0], b.shape[0]
    out = jnp.zeros((n + m, n + m), jnp.float32)
    out = out.at[:n, :n].set(a)
    out = out.at[n:, n:].set(b)
    return out


# --------------------------------------------------------------------------
# II_HGCN forward (model_structure = "normal")
# --------------------------------------------------------------------------
def ii_hgcn_forward(params, conv_au, conv_ai, user_sample_a, item_sample_a,
                    conv_bu, conv_bi, user_sample_b, item_sample_b,
                    HyGCN_a, HyGCN_b, *, single_layer_num):
    L = single_layer_num
    E = params["user_emb_a"].shape[1]
    n_ua = params["user_emb_a"].shape[0]
    n_ia = params["item_emb_a"].shape[0]
    n_ub = params["user_emb_b"].shape[0]
    n_ib = params["item_emb_b"].shape[0]
    bf16 = jnp.bfloat16

    # Static MXU operands: pre-cast to bf16 ONCE (halves DMA/VMEM bytes of the
    # largest operands) and block-diag pack the per-domain adjacencies so the
    # conv@X step is one matmul per domain.
    # TODO(synk): on v7x consider fp8 (e4m3) for the normalized adjacencies.
    conv_a_blk = _block_diag2(conv_au, conv_ai).astype(bf16)
    conv_b_blk = _block_diag2(conv_bu, conv_bi).astype(bf16)
    hga_bf = HyGCN_a.astype(bf16)
    hgb_bf = HyGCN_b.astype(bf16)

    # Stack per-layer params; pre-transpose the linear weights once; weights
    # feeding the MXU go in as bf16, element-wise params stay f32.
    wa_t = jnp.stack([w.T for w in params["lin_a_w"]]).astype(bf16)   # (L,E,E)
    wb_t = jnp.stack([w.T for w in params["lin_b_w"]]).astype(bf16)
    ba = jnp.stack([b.reshape(1, E) for b in params["lin_a_b"]])      # (L,1,E)
    bb = jnp.stack([b.reshape(1, E) for b in params["lin_b_b"]])
    ewau = jnp.stack(params["ew_a_user"])                             # (L,n_ua,E)
    ewbu = jnp.stack(params["ew_b_user"])
    ewai = jnp.stack(params["ew_a_item"])                             # (L,n_ia,E)
    ewbi = jnp.stack(params["ew_b_item"])                             # (L,n_ib,E)

    operands = (
        params["user_emb_a"], params["item_emb_a"],
        params["user_emb_b"], params["item_emb_b"],
        conv_a_blk, conv_b_blk, hga_bf, hgb_bf,
        wa_t, wb_t, ba, bb, ewau, ewbu, ewai, ewbi,
    )
    out_shapes = (
        jax.ShapeDtypeStruct((L + 1, n_ua, E), jnp.float32),
        jax.ShapeDtypeStruct((L + 1, n_ia, E), jnp.float32),
        jax.ShapeDtypeStruct((L + 1, n_ub, E), jnp.float32),
        jax.ShapeDtypeStruct((L + 1, n_ib, E), jnp.float32),
    )

    # Advisory cost estimate (matmul flops + operand/output bytes).
    na, nb = n_ua + n_ia, n_ub + n_ib
    flops = 0
    for i in range(L):
        if i != 0:
            flops += 2 * na * na * E + 2 * na * E * E     # domain A conv + lin
            flops += 2 * nb * nb * E + 2 * nb * E * E     # domain B conv + lin
        flops += 2 * n_ia * n_ib * E + 2 * n_ib * n_ia * E  # HyGCN transfers
    bytes_accessed = sum(int(x.size) * x.dtype.itemsize for x in operands)
    bytes_accessed += sum(math.prod(s.shape) * 4 for s in out_shapes)

    vmem = pltpu.MemorySpace.VMEM
    pua, pia, pub, pib = pl.pallas_call(
        functools.partial(_ii_hgcn_fused_kernel, num_layers=L,
                          n_ua=n_ua, n_ub=n_ub),
        out_shape=out_shapes,
        in_specs=[pl.BlockSpec(memory_space=vmem) for _ in operands],
        out_specs=tuple(pl.BlockSpec(memory_space=vmem) for _ in out_shapes),
        cost_estimate=pl.CostEstimate(flops=flops, transcendentals=0,
                                      bytes_accessed=bytes_accessed),
    )(*operands)

    # Data-dependent row gather + cosine head stay in plain JAX.
    ua = pua[:, user_sample_a, :]
    ia = pia[:, item_sample_a, :]
    ub = pub[:, user_sample_b, :]
    ib = pib[:, item_sample_b, :]
    return (_cosine_clamped(ua, ia, axes=(0, 2)),
            _cosine_clamped(ub, ib, axes=(0, 2)))


# --------------------------------------------------------------------------
# Pure-JAX reference.  mxu_dtype=bf16 mirrors the kernel numerics;
# mxu_dtype=f32 is a true full-precision baseline.
# --------------------------------------------------------------------------
def ii_hgcn_reference(params, conv_au, conv_ai, user_sample_a, item_sample_a,
                      conv_bu, conv_bi, user_sample_b, item_sample_b,
                      HyGCN_a, HyGCN_b, *, single_layer_num,
                      mxu_dtype=jnp.float32):
    def mm(a, b):
        return jnp.dot(a.astype(mxu_dtype), b.astype(mxu_dtype),
                       preferred_element_type=jnp.float32)

    Eua = [params["user_emb_a"]]
    Eia = [params["item_emb_a"]]
    Eub = [params["user_emb_b"]]
    Eib = [params["item_emb_b"]]

    for i in range(single_layer_num):
        Mua, Mia, Mub, Mib = Eua[-1], Eia[-1], Eub[-1], Eib[-1]
        if i != 0:
            wa, ba = params["lin_a_w"][i], params["lin_a_b"][i]
            wb, bb = params["lin_b_w"][i], params["lin_b_b"][i]

            def prop(conv, x, w, b):
                m = mm(conv, x)
                return jnp.maximum(mm(m, w.T) + b[None, :] + m, 0.0)

            Mua = prop(conv_au, Mua, wa, ba)
            Mia = prop(conv_ai, Mia, wa, ba)
            Mub = prop(conv_bu, Mub, wb, bb)
            Mib = prop(conv_bi, Mib, wb, bb)

        wau = params["ew_a_user"][i]
        wbu = params["ew_b_user"][i]
        wai = params["ew_a_item"][i]
        wbi = params["ew_b_item"][i]
        Mua_i = Mua * wau + Mub * (1.0 - wau)
        Mub_i = Mub * wbu + Mua * (1.0 - wbu)
        Mia_fb = jnp.maximum(mm(HyGCN_a, Mib), 0.0)
        Mib_fa = jnp.maximum(mm(HyGCN_b, Mia), 0.0)
        Mia_i = Mia * wai + Mia_fb * (1.0 - wai)
        Mib_i = Mib * wbi + Mib_fa * (1.0 - wbi)
        Eua.append(Mua_i)
        Eub.append(Mub_i)
        Eia.append(Mia_i)
        Eib.append(Mib_i)

    Pua = jnp.concatenate(Eua, axis=1)
    Pia = jnp.concatenate(Eia, axis=1)
    Pub = jnp.concatenate(Eub, axis=1)
    Pib = jnp.concatenate(Eib, axis=1)
    sa = _cosine_clamped(Pua[user_sample_a], Pia[item_sample_a], axes=1)
    sb = _cosine_clamped(Pub[user_sample_b], Pib[item_sample_b], axes=1)
    return sa, sb


# --------------------------------------------------------------------------
# Deterministic parameter construction (synthetic init, shapes from __init__)
# --------------------------------------------------------------------------
def make_params(key, embedding_size, user_num_a, item_num_a, user_num_b,
                item_num_b, single_layer_num):
    # As in the original PyTorch module, element_wise_*_user_W is sized
    # (common_user_num, E) == (user_num_a, E), so "normal" structure requires
    # a shared user set between the two domains.
    assert user_num_b == user_num_a, "normal structure assumes a shared user set"

    ks = jax.random.split(key, 12)
    E = embedding_size
    common = user_num_a

    def xavier(k, shape):
        fan_in, fan_out = shape[1], shape[0]
        a = jnp.sqrt(6.0 / (fan_in + fan_out))
        return jax.random.uniform(k, shape, jnp.float32, -a, a)

    return {
        "user_emb_a": jax.random.normal(ks[0], (user_num_a, E), jnp.float32),
        "item_emb_a": jax.random.normal(ks[1], (item_num_a, E), jnp.float32),
        "user_emb_b": jax.random.normal(ks[2], (user_num_b, E), jnp.float32),
        "item_emb_b": jax.random.normal(ks[3], (item_num_b, E), jnp.float32),
        "lin_a_w": [xavier(jax.random.fold_in(ks[4], i), (E, E))
                    for i in range(single_layer_num)],
        "lin_a_b": [jax.random.uniform(jax.random.fold_in(ks[5], i), (E,),
                                       jnp.float32, -0.1, 0.1)
                    for i in range(single_layer_num)],
        "lin_b_w": [xavier(jax.random.fold_in(ks[6], i), (E, E))
                    for i in range(single_layer_num)],
        "lin_b_b": [jax.random.uniform(jax.random.fold_in(ks[7], i), (E,),
                                       jnp.float32, -0.1, 0.1)
                    for i in range(single_layer_num)],
        "ew_a_user": [xavier(jax.random.fold_in(ks[8], i), (common, E))
                      for i in range(single_layer_num)],
        "ew_b_user": [xavier(jax.random.fold_in(ks[9], i), (common, E))
                      for i in range(single_layer_num)],
        "ew_a_item": [xavier(jax.random.fold_in(ks[10], i), (item_num_a, E))
                      for i in range(single_layer_num)],
        "ew_b_item": [xavier(jax.random.fold_in(ks[11], i), (item_num_b, E))
                      for i in range(single_layer_num)],
    }


# --------------------------------------------------------------------------
if __name__ == "__main__":
    key = jax.random.PRNGKey(0)

    embedding_size = 32
    user_num_a = 16      # common user set between the two domains
    user_num_b = 16
    item_num_a = 24
    item_num_b = 40
    single_layer_num = 2
    n_samples = 8

    params = make_params(key, embedding_size, user_num_a, item_num_a,
                         user_num_b, item_num_b, single_layer_num)

    k = jax.random.split(jax.random.PRNGKey(1), 10)
    conv_au = jax.random.uniform(k[0], (user_num_a, user_num_a), jnp.float32)
    conv_ai = jax.random.uniform(k[1], (item_num_a, item_num_a), jnp.float32)
    conv_bu = jax.random.uniform(k[2], (user_num_b, user_num_b), jnp.float32)
    conv_bi = jax.random.uniform(k[3], (item_num_b, item_num_b), jnp.float32)
    HyGCN_a = jax.random.uniform(k[4], (item_num_a, item_num_b), jnp.float32)
    HyGCN_b = jax.random.uniform(k[5], (item_num_b, item_num_a), jnp.float32)
    user_sample_a = jax.random.randint(k[6], (n_samples,), 0, user_num_a)
    item_sample_a = jax.random.randint(k[7], (n_samples,), 0, item_num_a)
    user_sample_b = jax.random.randint(k[8], (n_samples,), 0, user_num_b)
    item_sample_b = jax.random.randint(k[9], (n_samples,), 0, item_num_b)

    fwd = jax.jit(functools.partial(ii_hgcn_forward,
                                    single_layer_num=single_layer_num))
    score_a, score_b = fwd(params, conv_au, conv_ai, user_sample_a,
                           item_sample_a, conv_bu, conv_bi, user_sample_b,
                           item_sample_b, HyGCN_a, HyGCN_b)
    jax.block_until_ready((score_a, score_b))

    # bf16-matched reference (tight tolerance) ...
    ref_bf_a, ref_bf_b = ii_hgcn_reference(
        params, conv_au, conv_ai, user_sample_a, item_sample_a,
        conv_bu, conv_bi, user_sample_b, item_sample_b, HyGCN_a, HyGCN_b,
        single_layer_num=single_layer_num, mxu_dtype=jnp.bfloat16)
    # ... and a true f32 baseline (looser tolerance) to catch real drift.
    ref_f32_a, ref_f32_b = ii_hgcn_reference(
        params, conv_au, conv_ai, user_sample_a, item_sample_a,
        conv_bu, conv_bi, user_sample_b, item_sample_b, HyGCN_a, HyGCN_b,
        single_layer_num=single_layer_num, mxu_dtype=jnp.float32)
    jax.block_until_ready((ref_bf_a, ref_bf_b, ref_f32_a, ref_f32_b))

    assert score_a.shape == (n_samples,) and score_b.shape == (n_samples,)
    assert bool(jnp.all((score_a >= 0.0) & (score_a <= 1.0)))
    assert bool(jnp.all((score_b >= 0.0) & (score_b <= 1.0)))
    assert bool(jnp.allclose(score_a, ref_bf_a, rtol=5e-2, atol=5e-2))
    assert bool(jnp.allclose(score_b, ref_bf_b, rtol=5e-2, atol=5e-2))
    assert bool(jnp.allclose(score_a, ref_f32_a, rtol=1e-1, atol=1e-1))
    assert bool(jnp.allclose(score_b, ref_f32_b, rtol=1e-1, atol=1e-1))
    print("KERNEL_OK")
</pallas_src>

<mosaic_0001>
module attributes {stable_mosaic.version = 11 : i64} {
  func.func @_ii_hgcn_fused_kernel(%arg0: memref<16x32xf32, #tpu.memory_space<vmem>>, %arg1: memref<24x32xf32, #tpu.memory_space<vmem>>, %arg2: memref<16x32xf32, #tpu.memory_space<vmem>>, %arg3: memref<40x32xf32, #tpu.memory_space<vmem>>, %arg4: memref<40x40xbf16, #tpu.memory_space<vmem>>, %arg5: memref<56x56xbf16, #tpu.memory_space<vmem>>, %arg6: memref<24x40xbf16, #tpu.memory_space<vmem>>, %arg7: memref<40x24xbf16, #tpu.memory_space<vmem>>, %arg8: memref<2x32x32xbf16, #tpu.memory_space<vmem>>, %arg9: memref<2x32x32xbf16, #tpu.memory_space<vmem>>, %arg10: memref<2x1x32xf32, #tpu.memory_space<vmem>>, %arg11: memref<2x1x32xf32, #tpu.memory_space<vmem>>, %arg12: memref<2x16x32xf32, #tpu.memory_space<vmem>>, %arg13: memref<2x16x32xf32, #tpu.memory_space<vmem>>, %arg14: memref<2x24x32xf32, #tpu.memory_space<vmem>>, %arg15: memref<2x40x32xf32, #tpu.memory_space<vmem>>, %arg16: memref<3x16x32xf32, #tpu.memory_space<vmem>>, %arg17: memref<3x24x32xf32, #tpu.memory_space<vmem>>, %arg18: memref<3x16x32xf32, #tpu.memory_space<vmem>>, %arg19: memref<3x40x32xf32, #tpu.memory_space<vmem>>) attributes {dimension_semantics = [], scalar_prefetch = 0 : i64, scratch_operands = 0 : i64, tpu.core_type = #tpu.core_type<tc>} {
    %c0 = arith.constant 0 : index
    %c0_0 = arith.constant 0 : index
    %0 = vector.load %arg4[%c0, %c0_0] : memref<40x40xbf16, #tpu.memory_space<vmem>>, vector<40x40xbf16>
    %c0_1 = arith.constant 0 : index
    %c0_2 = arith.constant 0 : index
    %1 = vector.load %arg5[%c0_1, %c0_2] : memref<56x56xbf16, #tpu.memory_space<vmem>>, vector<56x56xbf16>
    %c0_3 = arith.constant 0 : index
    %c0_4 = arith.constant 0 : index
    %2 = vector.load %arg6[%c0_3, %c0_4] : memref<24x40xbf16, #tpu.memory_space<vmem>>, vector<24x40xbf16>
    %c0_5 = arith.constant 0 : index
    %c0_6 = arith.constant 0 : index
    %3 = vector.load %arg7[%c0_5, %c0_6] : memref<40x24xbf16, #tpu.memory_space<vmem>>, vector<40x24xbf16>
    %c0_7 = arith.constant 0 : index
    %c0_8 = arith.constant 0 : index
    %4 = vector.load %arg0[%c0_7, %c0_8] : memref<16x32xf32, #tpu.memory_space<vmem>>, vector<16x32xf32>
    %c0_9 = arith.constant 0 : index
    %c0_10 = arith.constant 0 : index
    %5 = vector.load %arg1[%c0_9, %c0_10] : memref<24x32xf32, #tpu.memory_space<vmem>>, vector<24x32xf32>
    %c0_11 = arith.constant 0 : index
    %c0_12 = arith.constant 0 : index
    %6 = vector.load %arg2[%c0_11, %c0_12] : memref<16x32xf32, #tpu.memory_space<vmem>>, vector<16x32xf32>
    %c0_13 = arith.constant 0 : index
    %c0_14 = arith.constant 0 : index
    %7 = vector.load %arg3[%c0_13, %c0_14] : memref<40x32xf32, #tpu.memory_space<vmem>>, vector<40x32xf32>
    %c0_15 = arith.constant 0 : index
    %c0_16 = arith.constant 0 : index
    %c0_17 = arith.constant 0 : index
    %8 = vector.load %arg16[%c0_15, %c0_16, %c0_17] : memref<3x16x32xf32, #tpu.memory_space<vmem>>, vector<1x16x32xf32>
    %9 = vector.shape_cast %8 : vector<1x16x32xf32> to vector<16x32xf32>
    %10 = vector.shape_cast %4 : vector<16x32xf32> to vector<1x16x32xf32>
    tpu.vector_store %arg16[%c0_15, %c0_16, %c0_17], %10 {strides = array<i32>} : memref<3x16x32xf32, #tpu.memory_space<vmem>>, vector<1x16x32xf32>,
    %c0_18 = arith.constant 0 : index
    %c0_19 = arith.constant 0 : index
    %c0_20 = arith.constant 0 : index
    %11 = vector.load %arg17[%c0_18, %c0_19, %c0_20] : memref<3x24x32xf32, #tpu.memory_space<vmem>>, vector<1x24x32xf32>
    %12 = vector.shape_cast %11 : vector<1x24x32xf32> to vector<24x32xf32>
    %13 = vector.shape_cast %5 : vector<24x32xf32> to vector<1x24x32xf32>
    tpu.vector_store %arg17[%c0_18, %c0_19, %c0_20], %13 {strides = array<i32>} : memref<3x24x32xf32, #tpu.memory_space<vmem>>, vector<1x24x32xf32>,
    %c0_21 = arith.constant 0 : index
    %c0_22 = arith.constant 0 : index
    %c0_23 = arith.constant 0 : index
    %14 = vector.load %arg18[%c0_21, %c0_22, %c0_23] : memref<3x16x32xf32, #tpu.memory_space<vmem>>, vector<1x16x32xf32>
    %15 = vector.shape_cast %14 : vector<1x16x32xf32> to vector<16x32xf32>
    %16 = vector.shape_cast %6 : vector<16x32xf32> to vector<1x16x32xf32>
    tpu.vector_store %arg18[%c0_21, %c0_22, %c0_23], %16 {strides = array<i32>} : memref<3x16x32xf32, #tpu.memory_space<vmem>>, vector<1x16x32xf32>,
    %c0_24 = arith.constant 0 : index
    %c0_25 = arith.constant 0 : index
    %c0_26 = arith.constant 0 : index
    %17 = vector.load %arg19[%c0_24, %c0_25, %c0_26] : memref<3x40x32xf32, #tpu.memory_space<vmem>>, vector<1x40x32xf32>
    %18 = vector.shape_cast %17 : vector<1x40x32xf32> to vector<40x32xf32>
    %19 = vector.shape_cast %7 : vector<40x32xf32> to vector<1x40x32xf32>
    tpu.vector_store %arg19[%c0_24, %c0_25, %c0_26], %19 {strides = array<i32>} : memref<3x40x32xf32, #tpu.memory_space<vmem>>, vector<1x40x32xf32>,
    %c0_27 = arith.constant 0 : index
    %c0_28 = arith.constant 0 : index
    %c0_29 = arith.constant 0 : index
    %20 = vector.load %arg12[%c0_27, %c0_28, %c0_29] : memref<2x16x32xf32, #tpu.memory_space<vmem>>, vector<1x16x32xf32>
    %21 = vector.shape_cast %20 : vector<1x16x32xf32> to vector<16x32xf32>
    %c0_30 = arith.constant 0 : index
    %c0_31 = arith.constant 0 : index
    %c0_32 = arith.constant 0 : index
    %22 = vector.load %arg13[%c0_30, %c0_31, %c0_32] : memref<2x16x32xf32, #tpu.memory_space<vmem>>, vector<1x16x32xf32>
    %23 = vector.shape_cast %22 : vector<1x16x32xf32> to vector<16x32xf32>
    %c0_33 = arith.constant 0 : index
    %c0_34 = arith.constant 0 : index
    %c0_35 = arith.constant 0 : index
    %24 = vector.load %arg14[%c0_33, %c0_34, %c0_35] : memref<2x24x32xf32, #tpu.memory_space<vmem>>, vector<1x24x32xf32>
    %25 = vector.shape_cast %24 : vector<1x24x32xf32> to vector<24x32xf32>
    %c0_36 = arith.constant 0 : index
    %c0_37 = arith.constant 0 : index
    %c0_38 = arith.constant 0 : index
    %26 = vector.load %arg15[%c0_36, %c0_37, %c0_38] : memref<2x40x32xf32, #tpu.memory_space<vmem>>, vector<1x40x32xf32>
    %27 = vector.shape_cast %26 : vector<1x40x32xf32> to vector<40x32xf32>
    %28 = arith.truncf %5 : vector<24x32xf32> to vector<24x32xbf16>
    %29 = arith.truncf %7 : vector<40x32xf32> to vector<40x32xbf16>
    %cst = arith.constant dense<0.000000e+00> : vector<24x32xf32>
    %30 = tpu.matmul %2, %29, %cst {dimension_numbers = #tpu.dot_dimension_numbers<[1], [0], [0], [1], [0, 0, 1, 1], [], []>} : vector<24x40xbf16>, vector<40x32xbf16>, vector<24x32xf32> -> vector<24x32xf32>
    %cst_39 = arith.constant 0.000000e+00 : f32
    %31 = vector.broadcast %cst_39 : f32 to vector<24x32xf32>
    %32 = arith.maximumf %30, %31 : vector<24x32xf32>
    %cst_40 = arith.constant dense<0.000000e+00> : vector<40x32xf32>
    %33 = tpu.matmul %3, %28, %cst_40 {dimension_numbers = #tpu.dot_dimension_numbers<[1], [0], [0], [1], [0, 0, 1, 1], [], []>} : vector<40x24xbf16>, vector<24x32xbf16>, vector<40x32xf32> -> vector<40x32xf32>
    %cst_41 = arith.constant 0.000000e+00 : f32
    %34 = vector.broadcast %cst_41 : f32 to vector<40x32xf32>
    %35 = arith.maximumf %33, %34 : vector<40x32xf32>
    %36 = arith.subf %4, %6 : vector<16x32xf32>
    %37 = arith.mulf %21, %36 : vector<16x32xf32>
    %38 = arith.addf %6, %37 : vector<16x32xf32>
    %39 = arith.subf %6, %4 : vector<16x32xf32>
    %40 = arith.mulf %23, %39 : vector<16x32xf32>
    %41 = arith.addf %4, %40 : vector<16x32xf32>
    %42 = arith.subf %5, %32 : vector<24x32xf32>
    %43 = arith.mulf %25, %42 : vector<24x32xf32>
    %44 = arith.addf %32, %43 : vector<24x32xf32>
    %45 = arith.subf %7, %35 : vector<40x32xf32>
    %46 = arith.mulf %27, %45 : vector<40x32xf32>
    %47 = arith.addf %35, %46 : vector<40x32xf32>
    %c1 = arith.constant 1 : index
    %c0_42 = arith.constant 0 : index
    %c0_43 = arith.constant 0 : index
    %48 = vector.load %arg16[%c1, %c0_42, %c0_43] : memref<3x16x32xf32, #tpu.memory_space<vmem>>, vector<1x16x32xf32>
    %49 = vector.shape_cast %48 : vector<1x16x32xf32> to vector<16x32xf32>
    %50 = vector.shape_cast %38 : vector<16x32xf32> to vector<1x16x32xf32>
    tpu.vector_store %arg16[%c1, %c0_42, %c0_43], %50 {strides = array<i32>} : memref<3x16x32xf32, #tpu.memory_space<vmem>>, vector<1x16x32xf32>,
    %c1_44 = arith.constant 1 : index
    %c0_45 = arith.constant 0 : index
    %c0_46 = arith.constant 0 : index
    %51 = vector.load %arg18[%c1_44, %c0_45, %c0_46] : memref<3x16x32xf32, #tpu.memory_space<vmem>>, vector<1x16x32xf32>
    %52 = vector.shape_cast %51 : vector<1x16x32xf32> to vector<16x32xf32>
    %53 = vector.shape_cast %41 : vector<16x32xf32> to vector<1x16x32xf32>
    tpu.vector_store %arg18[%c1_44, %c0_45, %c0_46], %53 {strides = array<i32>} : memref<3x16x32xf32, #tpu.memory_space<vmem>>, vector<1x16x32xf32>,
    %c1_47 = arith.constant 1 : index
    %c0_48 = arith.constant 0 : index
    %c0_49 = arith.constant 0 : index
    %54 = vector.load %arg17[%c1_47, %c0_48, %c0_49] : memref<3x24x32xf32, #tpu.memory_space<vmem>>, vector<1x24x32xf32>
    %55 = vector.shape_cast %54 : vector<1x24x32xf32> to vector<24x32xf32>
    %56 = vector.shape_cast %44 : vector<24x32xf32> to vector<1x24x32xf32>
    tpu.vector_store %arg17[%c1_47, %c0_48, %c0_49], %56 {strides = array<i32>} : memref<3x24x32xf32, #tpu.memory_space<vmem>>, vector<1x24x32xf32>,
    %c1_50 = arith.constant 1 : index
    %c0_51 = arith.constant 0 : index
    %c0_52 = arith.constant 0 : index
    %57 = vector.load %arg19[%c1_50, %c0_51, %c0_52] : memref<3x40x32xf32, #tpu.memory_space<vmem>>, vector<1x40x32xf32>
    %58 = vector.shape_cast %57 : vector<1x40x32xf32> to vector<40x32xf32>
    %59 = vector.shape_cast %47 : vector<40x32xf32> to vector<1x40x32xf32>
    tpu.vector_store %arg19[%c1_50, %c0_51, %c0_52], %59 {strides = array<i32>} : memref<3x40x32xf32, #tpu.memory_space<vmem>>, vector<1x40x32xf32>,
    %c1_53 = arith.constant 1 : index
    %c0_54 = arith.constant 0 : index
    %c0_55 = arith.constant 0 : index
    %60 = vector.load %arg8[%c1_53, %c0_54, %c0_55] : memref<2x32x32xbf16, #tpu.memory_space<vmem>>, vector<1x32x32xbf16>
    %61 = vector.shape_cast %60 : vector<1x32x32xbf16> to vector<32x32xbf16>
    %c1_56 = arith.constant 1 : index
    %c0_57 = arith.constant 0 : index
    %c0_58 = arith.constant 0 : index
    %62 = vector.load %arg9[%c1_56, %c0_57, %c0_58] : memref<2x32x32xbf16, #tpu.memory_space<vmem>>, vector<1x32x32xbf16>
    %63 = vector.shape_cast %62 : vector<1x32x32xbf16> to vector<32x32xbf16>
    %c1_59 = arith.constant 1 : index
    %c0_60 = arith.constant 0 : index
    %c0_61 = arith.constant 0 : index
    %64 = vector.load %arg10[%c1_59, %c0_60, %c0_61] : memref<2x1x32xf32, #tpu.memory_space<vmem>>, vector<1x1x32xf32>
    %65 = vector.shape_cast %64 : vector<1x1x32xf32> to vector<1x32xf32>
    %c1_62 = arith.constant 1 : index
    %c0_63 = arith.constant 0 : index
    %c0_64 = arith.constant 0 : index
    %66 = vector.load %arg11[%c1_62, %c0_63, %c0_64] : memref<2x1x32xf32, #tpu.memory_space<vmem>>, vector<1x1x32xf32>
    %67 = vector.shape_cast %66 : vector<1x1x32xf32> to vector<1x32xf32>
    %68 = tpu.concatenate %38, %44 in 0 : vector<16x32xf32>, vector<24x32xf32> -> vector<40x32xf32>
    %69 = arith.truncf %68 : vector<40x32xf32> to vector<40x32xbf16>
    %70 = tpu.concatenate %41, %47 in 0 : vector<16x32xf32>, vector<40x32xf32> -> vector<56x32xf32>
    %71 = arith.truncf %70 : vector<56x32xf32> to vector<56x32xbf16>
    %cst_65 = arith.constant dense<0.000000e+00> : vector<40x32xf32>
    %72 = tpu.matmul %0, %69, %cst_65 {dimension_numbers = #tpu.dot_dimension_numbers<[1], [0], [0], [1], [0, 0, 1, 1], [], []>} : vector<40x40xbf16>, vector<40x32xbf16>, vector<40x32xf32> -> vector<40x32xf32>
    %cst_66 = arith.constant dense<0.000000e+00> : vector<56x32xf32>
    %73 = tpu.matmul %1, %71, %cst_66 {dimension_numbers = #tpu.dot_dimension_numbers<[1], [0], [0], [1], [0, 0, 1, 1], [], []>} : vector<56x56xbf16>, vector<56x32xbf16>, vector<56x32xf32> -> vector<56x32xf32>
    %74 = arith.truncf %72 : vector<40x32xf32> to vector<40x32xbf16>
    %cst_67 = arith.constant dense<0.000000e+00> : vector<40x32xf32>
    %75 = tpu.matmul %74, %61, %cst_67 {dimension_numbers = #tpu.dot_dimension_numbers<[1], [0], [0], [1], [0, 0, 1, 1], [], []>} : vector<40x32xbf16>, vector<32x32xbf16>, vector<40x32xf32> -> vector<40x32xf32>
    %76 = vector.broadcast %65 : vector<1x32xf32> to vector<40x32xf32>
    %77 = arith.addf %75, %76 : vector<40x32xf32>
    %78 = arith.addf %77, %72 : vector<40x32xf32>
    %cst_68 = arith.constant 0.000000e+00 : f32
    %79 = vector.broadcast %cst_68 : f32 to vector<40x32xf32>
    %80 = arith.maximumf %78, %79 : vector<40x32xf32>
    %81 = arith.truncf %73 : vector<56x32xf32> to vector<56x32xbf16>
    %cst_69 = arith.constant dense<0.000000e+00> : vector<56x32xf32>
    %82 = tpu.matmul %81, %63, %cst_69 {dimension_numbers = #tpu.dot_dimension_numbers<[1], [0], [0], [1], [0, 0, 1, 1], [], []>} : vector<56x32xbf16>, vector<32x32xbf16>, vector<56x32xf32> -> vector<56x32xf32>
    %83 = vector.broadcast %67 : vector<1x32xf32> to vector<56x32xf32>
    %84 = arith.addf %82, %83 : vector<56x32xf32>
    %85 = arith.addf %84, %73 : vector<56x32xf32>
    %cst_70 = arith.constant 0.000000e+00 : f32
    %86 = vector.broadcast %cst_70 : f32 to vector<56x32xf32>
    %87 = arith.maximumf %85, %86 : vector<56x32xf32>
    %88 = vector.extract_strided_slice %80 {offsets = [0, 0], sizes = [16, 32], strides = [1, 1]} : vector<40x32xf32> to vector<16x32xf32>
    %89 = vector.extract_strided_slice %80 {offsets = [16, 0], sizes = [24, 32], strides = [1, 1]} : vector<40x32xf32> to vector<24x32xf32>
    %90 = vector.extract_strided_slice %87 {offsets = [0, 0], sizes = [16, 32], strides = [1, 1]} : vector<56x32xf32> to vector<16x32xf32>
    %91 = vector.extract_strided_slice %87 {offsets = [16, 0], sizes = [40, 32], strides = [1, 1]} : vector<56x32xf32> to vector<40x32xf32>
    %c1_71 = arith.constant 1 : index
    %c0_72 = arith.constant 0 : index
    %c0_73 = arith.constant 0 : index
    %92 = vector.load %arg12[%c1_71, %c0_72, %c0_73] : memref<2x16x32xf32, #tpu.memory_space<vmem>>, vector<1x16x32xf32>
    %93 = vector.shape_cast %92 : vector<1x16x32xf32> to vector<16x32xf32>
    %c1_74 = arith.constant 1 : index
    %c0_75 = arith.constant 0 : index
    %c0_76 = arith.constant 0 : index
    %94 = vector.load %arg13[%c1_74, %c0_75, %c0_76] : memref<2x16x32xf32, #tpu.memory_space<vmem>>, vector<1x16x32xf32>
    %95 = vector.shape_cast %94 : vector<1x16x32xf32> to vector<16x32xf32>
    %c1_77 = arith.constant 1 : index
    %c0_78 = arith.constant 0 : index
    %c0_79 = arith.constant 0 : index
    %96 = vector.load %arg14[%c1_77, %c0_78, %c0_79] : memref<2x24x32xf32, #tpu.memory_space<vmem>>, vector<1x24x32xf32>
    %97 = vector.shape_cast %96 : vector<1x24x32xf32> to vector<24x32xf32>
    %c1_80 = arith.constant 1 : index
    %c0_81 = arith.constant 0 : index
    %c0_82 = arith.constant 0 : index
    %98 = vector.load %arg15[%c1_80, %c0_81, %c0_82] : memref<2x40x32xf32, #tpu.memory_space<vmem>>, vector<1x40x32xf32>
    %99 = vector.shape_cast %98 : vector<1x40x32xf32> to vector<40x32xf32>
    %100 = arith.truncf %89 : vector<24x32xf32> to vector<24x32xbf16>
    %101 = arith.truncf %91 : vector<40x32xf32> to vector<40x32xbf16>
    %cst_83 = arith.constant dense<0.000000e+00> : vector<24x32xf32>
    %102 = tpu.matmul %2, %101, %cst_83 {dimension_numbers = #tpu.dot_dimension_numbers<[1], [0], [0], [1], [0, 0, 1, 1], [], []>} : vector<24x40xbf16>, vector<40x32xbf16>, vector<24x32xf32> -> vector<24x32xf32>
    %cst_84 = arith.constant 0.000000e+00 : f32
    %103 = vector.broadcast %cst_84 : f32 to vector<24x32xf32>
    %104 = arith.maximumf %102, %103 : vector<24x32xf32>
    %cst_85 = arith.constant dense<0.000000e+00> : vector<40x32xf32>
    %105 = tpu.matmul %3, %100, %cst_85 {dimension_numbers = #tpu.dot_dimension_numbers<[1], [0], [0], [1], [0, 0, 1, 1], [], []>} : vector<40x24xbf16>, vector<24x32xbf16>, vector<40x32xf32> -> vector<40x32xf32>
    %cst_86 = arith.constant 0.000000e+00 : f32
    %106 = vector.broadcast %cst_86 : f32 to vector<40x32xf32>
    %107 = arith.maximumf %105, %106 : vector<40x32xf32>
    %108 = arith.subf %88, %90 : vector<16x32xf32>
    %109 = arith.mulf %93, %108 : vector<16x32xf32>
    %110 = arith.addf %90, %109 : vector<16x32xf32>
    %111 = arith.subf %90, %88 : vector<16x32xf32>
    %112 = arith.mulf %95, %111 : vector<16x32xf32>
    %113 = arith.addf %88, %112 : vector<16x32xf32>
    %114 = arith.subf %89, %104 : vector<24x32xf32>
    %115 = arith.mulf %97, %114 : vector<24x32xf32>
    %116 = arith.addf %104, %115 : vector<24x32xf32>
    %117 = arith.subf %91, %107 : vector<40x32xf32>
    %118 = arith.mulf %99, %117 : vector<40x32xf32>
    %119 = arith.addf %107, %118 : vector<40x32xf32>
    %c2 = arith.constant 2 : index
    %c0_87 = arith.constant 0 : index
    %c0_88 = arith.constant 0 : index
    %120 = vector.load %arg16[%c2, %c0_87, %c0_88] : memref<3x16x32xf32, #tpu.memory_space<vmem>>, vector<1x16x32xf32>
    %121 = vector.shape_cast %120 : vector<1x16x32xf32> to vector<16x32xf32>
    %122 = vector.shape_cast %110 : vector<16x32xf32> to vector<1x16x32xf32>
    tpu.vector_store %arg16[%c2, %c0_87, %c0_88], %122 {strides = array<i32>} : memref<3x16x32xf32, #tpu.memory_space<vmem>>, vector<1x16x32xf32>,
    %c2_89 = arith.constant 2 : index
    %c0_90 = arith.constant 0 : index
    %c0_91 = arith.constant 0 : index
    %123 = vector.load %arg18[%c2_89, %c0_90, %c0_91] : memref<3x16x32xf32, #tpu.memory_space<vmem>>, vector<1x16x32xf32>
    %124 = vector.shape_cast %123 : vector<1x16x32xf32> to vector<16x32xf32>
    %125 = vector.shape_cast %113 : vector<16x32xf32> to vector<1x16x32xf32>
    tpu.vector_store %arg18[%c2_89, %c0_90, %c0_91], %125 {strides = array<i32>} : memref<3x16x32xf32, #tpu.memory_space<vmem>>, vector<1x16x32xf32>,
    %c2_92 = arith.constant 2 : index
    %c0_93 = arith.constant 0 : index
    %c0_94 = arith.constant 0 : index
    %126 = vector.load %arg17[%c2_92, %c0_93, %c0_94] : memref<3x24x32xf32, #tpu.memory_space<vmem>>, vector<1x24x32xf32>
    %127 = vector.shape_cast %126 : vector<1x24x32xf32> to vector<24x32xf32>
    %128 = vector.shape_cast %116 : vector<24x32xf32> to vector<1x24x32xf32>
    tpu.vector_store %arg17[%c2_92, %c0_93, %c0_94], %128 {strides = array<i32>} : memref<3x24x32xf32, #tpu.memory_space<vmem>>, vector<1x24x32xf32>,
    %c2_95 = arith.constant 2 : index
    %c0_96 = arith.constant 0 : index
    %c0_97 = arith.constant 0 : index
    %129 = vector.load %arg19[%c2_95, %c0_96, %c0_97] : memref<3x40x32xf32, #tpu.memory_space<vmem>>, vector<1x40x32xf32>
    %130 = vector.shape_cast %129 : vector<1x40x32xf32> to vector<40x32xf32>
    %131 = vector.shape_cast %119 : vector<40x32xf32> to vector<1x40x32xf32>
    tpu.vector_store %arg19[%c2_95, %c0_96, %c0_97], %131 {strides = array<i32>} : memref<3x40x32xf32, #tpu.memory_space<vmem>>, vector<1x40x32xf32>,
    return
  }
}

</mosaic_0001>

<llo_original>
// kernel: ii_hgcn_forward.1
$region0: #{ii_hgcn_forward.1}
  #allocation0 [shape = 'u32[]', space=smem, size = 0x4, offset = 0x4, fixed_abs, tag = 'smem constant byte address 0x4 - core index']
  #allocation1 [shape = 'u32[144,128]{1,0:T(1,128)}', space=vmem, size = 0x12000, scoped, tag = 'internal scratch']
  %s0 = inlined_call_operand.vmem [shape: f32[16,32], index: 0, kind: input, shape index: {}]
  %s1 = inlined_call_operand.vmem [shape: f32[24,32], index: 1, kind: input, shape index: {}]
  %s2 = inlined_call_operand.vmem [shape: f32[16,32], index: 2, kind: input, shape index: {}]
  %s3 = inlined_call_operand.vmem [shape: f32[40,32], index: 3, kind: input, shape index: {}]
  %s4 = inlined_call_operand.vmem [shape: bf16[40,40], index: 4, kind: input, shape index: {}]
  %s5 = inlined_call_operand.vmem [shape: bf16[56,56], index: 5, kind: input, shape index: {}]
  %s6 = inlined_call_operand.vmem [shape: bf16[24,40], index: 6, kind: input, shape index: {}]
  %s7 = inlined_call_operand.vmem [shape: bf16[40,24], index: 7, kind: input, shape index: {}]
  %s8 = inlined_call_operand.vmem [shape: bf16[2,32,32], index: 8, kind: input, shape index: {}]
  %s9 = inlined_call_operand.vmem [shape: bf16[2,32,32], index: 9, kind: input, shape index: {}]
  %s10 = inlined_call_operand.vmem [shape: f32[2,1,32], index: 10, kind: input, shape index: {}]
  %s11 = inlined_call_operand.vmem [shape: f32[2,1,32], index: 11, kind: input, shape index: {}]
  %s12 = inlined_call_operand.vmem [shape: f32[2,16,32], index: 12, kind: input, shape index: {}]
  %s13 = inlined_call_operand.vmem [shape: f32[2,16,32], index: 13, kind: input, shape index: {}]
  %s14 = inlined_call_operand.vmem [shape: f32[2,24,32], index: 14, kind: input, shape index: {}]
  %s15 = inlined_call_operand.vmem [shape: f32[2,40,32], index: 15, kind: input, shape index: {}]
  %s16 = inlined_call_operand.vmem [shape: f32[3,16,32], index: 16, kind: output, shape index: {0}]
  %s17 = inlined_call_operand.vmem [shape: f32[3,24,32], index: 17, kind: output, shape index: {1}]
  %s18 = inlined_call_operand.vmem [shape: f32[3,16,32], index: 18, kind: output, shape index: {2}]
  %s19 = inlined_call_operand.vmem [shape: f32[3,40,32], index: 19, kind: output, shape index: {3}]
  %20 = xla_tuple %s16, %s17, %s18, %s19
  %s21 = sld [smem:[#allocation0]]
  $region98: #{ii_hgcn_forward.1} parent=0
    _
  %s23 = ssub.s32 1, %s21
  %s24 = scalar_select 0, %s23, %s21
  // Predicated region
  $region2: #{ii_hgcn_forward.1} parent=0 // pred_check
    _
  $region3: #{ii_hgcn_forward.1} parent=0 // pred_check_branch
    %26 = sbr.rel (0) target = $region5
  $region4: #{ii_hgcn_forward.1} parent=0 // pred_region
    _
  $region5: #{ii_hgcn_forward.1} parent=0 // pred_fallthru
    _
  // Predicated region
  $region6: #{ii_hgcn_forward.1} parent=0 // pred_check
    _
  $region7: #{ii_hgcn_forward.1} parent=0 // pred_check_branch
    %28 = sbr.rel (0) target = $region9
  $region8: #{ii_hgcn_forward.1} parent=0 // pred_region
    _
  $region9: #{ii_hgcn_forward.1} parent=0 // pred_fallthru
    _
  // Predicated region
  $region10: #{ii_hgcn_forward.1} parent=0 // pred_check
    _
  $region11: #{ii_hgcn_forward.1} parent=0 // pred_check_branch
    %30 = sbr.rel (0) target = $region13
  $region12: #{ii_hgcn_forward.1} parent=0 // pred_region
    _
  $region13: #{ii_hgcn_forward.1} parent=0 // pred_fallthru
    _
  // Predicated region
  $region14: #{ii_hgcn_forward.1} parent=0 // pred_check
    _
  $region15: #{ii_hgcn_forward.1} parent=0 // pred_check_branch
    %32 = sbr.rel (0) target = $region17
  $region16: #{ii_hgcn_forward.1} parent=0 // pred_region
    _
  $region17: #{ii_hgcn_forward.1} parent=0 // pred_fallthru
    _
  // Predicated region
  $region18: #{ii_hgcn_forward.1} parent=0 // pred_check
    _
  $region19: #{ii_hgcn_forward.1} parent=0 // pred_check_branch
    %34 = sbr.rel (0) target = $region21
  $region20: #{ii_hgcn_forward.1} parent=0 // pred_region
    _
  $region21: #{ii_hgcn_forward.1} parent=0 // pred_fallthru
    _
  // Predicated region
  $region22: #{ii_hgcn_forward.1} parent=0 // pred_check
    _
  $region23: #{ii_hgcn_forward.1} parent=0 // pred_check_branch
    %36 = sbr.rel (0) target = $region25
  $region24: #{ii_hgcn_forward.1} parent=0 // pred_region
    _
  $region25: #{ii_hgcn_forward.1} parent=0 // pred_fallthru
    _
  // Predicated region
  $region26: #{ii_hgcn_forward.1} parent=0 // pred_check
    _
  $region27: #{ii_hgcn_forward.1} parent=0 // pred_check_branch
    %38 = sbr.rel (0) target = $region29
  $region28: #{ii_hgcn_forward.1} parent=0 // pred_region
    _
  $region29: #{ii_hgcn_forward.1} parent=0 // pred_fallthru
    _
  // Predicated region
  $region30: #{ii_hgcn_forward.1} parent=0 // pred_check
    _
  $region31: #{ii_hgcn_forward.1} parent=0 // pred_check_branch
    %40 = sbr.rel (0) target = $region33
  $region32: #{ii_hgcn_forward.1} parent=0 // pred_region
    _
  $region33: #{ii_hgcn_forward.1} parent=0 // pred_fallthru
    _
  // Predicated region
  $region34: #{ii_hgcn_forward.1} parent=0 // pred_check
    _
  $region35: #{ii_hgcn_forward.1} parent=0 // pred_check_branch
    %42 = sbr.rel (0) target = $region37
  $region36: #{ii_hgcn_forward.1} parent=0 // pred_region
    _
  $region37: #{ii_hgcn_forward.1} parent=0 // pred_fallthru
    _
  // Predicated region
  $region38: #{ii_hgcn_forward.1} parent=0 // pred_check
    _
  $region39: #{ii_hgcn_forward.1} parent=0 // pred_check_branch
    %44 = sbr.rel (0) target = $region41
  $region40: #{ii_hgcn_forward.1} parent=0 // pred_region
    _
  $region41: #{ii_hgcn_forward.1} parent=0 // pred_fallthru
    _
  // Predicated region
  $region42: #{ii_hgcn_forward.1} parent=0 // pred_check
    _
  $region43: #{ii_hgcn_forward.1} parent=0 // pred_check_branch
    %46 = sbr.rel (0) target = $region45
  $region44: #{ii_hgcn_forward.1} parent=0 // pred_region
    _
  $region45: #{ii_hgcn_forward.1} parent=0 // pred_fallthru
    _
  // Predicated region
  $region46: #{ii_hgcn_forward.1} parent=0 // pred_check
    _
  $region47: #{ii_hgcn_forward.1} parent=0 // pred_check_branch
    %48 = sbr.rel (0) target = $region49
  $region48: #{ii_hgcn_forward.1} parent=0 // pred_region
    _
  $region49: #{ii_hgcn_forward.1} parent=0 // pred_fallthru
    _
  // Predicated region
  $region50: #{ii_hgcn_forward.1} parent=0 // pred_check
    _
  $region51: #{ii_hgcn_forward.1} parent=0 // pred_check_branch
    %50 = sbr.rel (0) target = $region53
  $region52: #{ii_hgcn_forward.1} parent=0 // pred_region
    _
  $region53: #{ii_hgcn_forward.1} parent=0 // pred_fallthru
    _
  // Predicated region
  $region54: #{ii_hgcn_forward.1} parent=0 // pred_check
    _
  $region55: #{ii_hgcn_forward.1} parent=0 // pred_check_branch
    %52 = sbr.rel (0) target = $region57
  $region56: #{ii_hgcn_forward.1} parent=0 // pred_region
    _
  $region57: #{ii_hgcn_forward.1} parent=0 // pred_fallthru
    _
  // Predicated region
  $region58: #{ii_hgcn_forward.1} parent=0 // pred_check
    _
  $region59: #{ii_hgcn_forward.1} parent=0 // pred_check_branch
    %54 = sbr.rel (0) target = $region61
  $region60: #{ii_hgcn_forward.1} parent=0 // pred_region
    _
  $region61: #{ii_hgcn_forward.1} parent=0 // pred_fallthru
    _
  // Predicated region
  $region62: #{ii_hgcn_forward.1} parent=0 // pred_check
    _
  $region63: #{ii_hgcn_forward.1} parent=0 // pred_check_branch
    %56 = sbr.rel (0) target = $region65
  $region64: #{ii_hgcn_forward.1} parent=0 // pred_region
    _
  $region65: #{ii_hgcn_forward.1} parent=0 // pred_fallthru
    _
  %v58 = vld [vmem:[%s4] sm:$0xf]
  %v59 = vld [vmem:[%s4 + $0x4] sm:$0xf]
  %v60 = vld [vmem:[%s4 + $0x8] sm:$0xf]
  %v61 = vld [vmem:[%s4 + $0xc] sm:$0xf]
  %v62 = vld [vmem:[%s4 + $0x10] sm:$0xf]
  %v63 = vld [vmem:[%s5] sm:$0xf]
  %v64 = vld [vmem:[%s5 + $0x4] sm:$0xf]
  %v65 = vld [vmem:[%s5 + $0x8] sm:$0xf]
  %v66 = vld [vmem:[%s5 + $0xc] sm:$0xf]
  %v67 = vld [vmem:[%s5 + $0x10] sm:$0xf]
  %v68 = vld [vmem:[%s5 + $0x14] sm:$0xf]
  %v69 = vld [vmem:[%s5 + $0x18] sm:$0xf]
  %v70 = vld [vmem:[%s6] sm:$0xf]
  %v71 = vld [vmem:[%s6 + $0x4] sm:$0xf]
  %v72 = vld [vmem:[%s6 + $0x8] sm:$0xf]
  %v73 = vld [vmem:[%s7] sm:$0xf]
  %v74 = vld [vmem:[%s7 + $0x4] sm:$0xf]
  %v75 = vld [vmem:[%s7 + $0x8] sm:$0xf]
  %v76 = vld [vmem:[%s7 + $0xc] sm:$0xf]
  %v77 = vld [vmem:[%s7 + $0x10] sm:$0xf]
  %v78 = vld [vmem:[%s0] sm:$0xff]
  %v79 = vld [vmem:[%s0 + $0x8] sm:$0xff]
  %v80 = vld [vmem:[%s1] sm:$0xff]
  %v81 = vld [vmem:[%s1 + $0x8] sm:$0xff]
  %v82 = vld [vmem:[%s1 + $0x10] sm:$0xff]
  %v83 = vld [vmem:[%s2] sm:$0xff]
  %v84 = vld [vmem:[%s2 + $0x8] sm:$0xff]
  %v85 = vld [vmem:[%s3] sm:$0xff]
  %v86 = vld [vmem:[%s3 + $0x8] sm:$0xff]
  %v87 = vld [vmem:[%s3 + $0x10] sm:$0xff]
  %v88 = vld [vmem:[%s3 + $0x18] sm:$0xff]
  %v89 = vld [vmem:[%s3 + $0x20] sm:$0xff]
  %vm90 = vcmask 261120
  %91 = vst.msk [vmem:[%s16] sm:$0xff] %vm90, %v78
  %92 = vst.msk [vmem:[%s16 + $0x8] sm:$0xff] %vm90, %v79
  %93 = vst.msk [vmem:[%s17] sm:$0xff] %vm90, %v80
  %94 = vst.msk [vmem:[%s17 + $0x8] sm:$0xff] %vm90, %v81
  %95 = vst.msk [vmem:[%s17 + $0x10] sm:$0xff] %vm90, %v82
  %96 = vst.msk [vmem:[%s18] sm:$0xff] %vm90, %v83
  %97 = vst.msk [vmem:[%s18 + $0x8] sm:$0xff] %vm90, %v84
  %98 = vst.msk [vmem:[%s19] sm:$0xff] %vm90, %v85
  %99 = vst.msk [vmem:[%s19 + $0x8] sm:$0xff] %vm90, %v86
  %100 = vst.msk [vmem:[%s19 + $0x10] sm:$0xff] %vm90, %v87
  %101 = vst.msk [vmem:[%s19 + $0x18] sm:$0xff] %vm90, %v88
  %102 = vst.msk [vmem:[%s19 + $0x20] sm:$0xff] %vm90, %v89
  %v103 = vld [vmem:[%s12] sm:$0xff]
  %v104 = vld [vmem:[%s12 + $0x8] sm:$0xff]
  %v105 = vld [vmem:[%s13] sm:$0xff]
  %v106 = vld [vmem:[%s13 + $0x8] sm:$0xff]
  %v107 = vld [vmem:[%s14] sm:$0xff]
  %v108 = vld [vmem:[%s14 + $0x8] sm:$0xff]
  %v109 = vld [vmem:[%s14 + $0x10] sm:$0xff]
  %v110 = vld [vmem:[%s15] sm:$0xff]
  %v111 = vld [vmem:[%s15 + $0x8] sm:$0xff]
  %v112 = vld [vmem:[%s15 + $0x10] sm:$0xff]
  %v113 = vld [vmem:[%s15 + $0x18] sm:$0xff]
  %v114 = vld [vmem:[%s15 + $0x20] sm:$0xff]
  %v115 = vpack.c.bf16 %v81, %v80
  %v116 = vpack.c.bf16 %v82, %v82
  %v117 = vpack.c.bf16 %v86, %v85
  %v118 = vpack.c.bf16 %v88, %v87
  %v119 = vpack.c.bf16 %v89, %v89
  %v123 = vunpack.c.l.b16 %v70
  %v124 = vunpack.c.l.b16 %v71
  %v125 = vunpack.c.l.b16 %v72
  %v126 = vpack.c.b16 %v124, %v123
  %v127 = vpack.c.b16 %v125, %v125
  %vm128 = vcmask 326656
  %v130 = vsel %vm128, %v126, 0
  %v133 = vsel %vm128, %v127, 0
  %vm135 = vcmask 1043456
  %v137 = vsel %vm135, %v119, 0
  %139 = vmatprep.subr.bf16.mxu0 0
  %140 = vmatpush1.bf16.msra.mxu0 %v117
  %141 = vmatprep.subr.bf16.mxu0 0
  %142 = vmatpush1.bf16.msra.mxu0 %v118
  %143 = vmatprep.subr.bf16.mxu0 0
  %144 = vmatpush1.bf16.msra.mxu0 %v137
  %145 = vmatprep.subr.bf16.mxu0 0
  %146 = vmatpush1.bf16.msra.mxu0 0
  %147 = vmatprep.subr.bf16.mxu0 0
  %148 = vmatpush1.bf16.msra.mxu0 0
  %149 = vmatprep.subr.bf16.mxu0 0
  %150 = vmatpush1.bf16.msra.mxu0 0
  %151 = vmatprep.subr.bf16.mxu0 0
  %152 = vmatpush1.bf16.msra.mxu0 0
  %153 = vmatprep.subr.bf16.mxu0 0
  %154 = vmatpush1.bf16.msra.mxu0 0
  %155 = vmatprep.subr.bf16.mxu0 0
  %156 = vmatpush1.bf16.msra.mxu0 0
  %157 = vmatprep.subr.bf16.mxu0 0
  %158 = vmatpush1.bf16.msra.mxu0 0
  %159 = vmatprep.subr.bf16.mxu0 0
  %160 = vmatpush1.bf16.msra.mxu0 0
  %161 = vmatprep.subr.bf16.mxu0 0
  %162 = vmatpush1.bf16.msra.mxu0 0
  %163 = vmatprep.subr.bf16.mxu0 0
  %164 = vmatpush1.bf16.msra.mxu0 0
  %165 = vmatprep.subr.bf16.mxu0 0
  %166 = vmatpush1.bf16.msra.mxu0 0
  %167 = vmatprep.subr.bf16.mxu0 0
  %168 = vmatpush1.bf16.msra.mxu0 0
  %169 = vmatprep.subr.bf16.mxu0 0
  %170 = vmatpush1.bf16.msra.mxu0 0
  %171 = vmatprep.mubr.bf16.mxu0 0
  %172 = vmatmul.mubr.bf16.gmra.mrb[0].mxu0 %v130
  %v173 = vpop.f32.mrb[0].mxu0
  %v174 = vadd.f32 0.0, %v173
  %v175 = vpop.f32.mrb[0].mxu0
  %v176 = vpop.f32.mrb[0].mxu0
  %v177 = vadd.f32 0.0, %v176
  %v178 = vpop.f32.mrb[0].mxu0
  %179 = vmatprep.mubr.bf16.mxu0 0
  %180 = vmatmul.mubr.bf16.gmra.mrb[0].mxu0 %v133
  %v181 = vpop.f32.mrb[0].mxu0
  %v182 = vadd.f32 0.0, %v181
  %v183 = vpop.f32.mrb[0].mxu0
  %v184 = vpop.f32.mrb[0].mxu0
  %v185 = vpop.f32.mrb[0].mxu0
  %186 = vdwg.mxu0
  %v187 = vmax.f32 %v174, 0.0
  %v188 = vmax.f32 %v177, 0.0
  %v189 = vmax.f32 %v182, 0.0
  %v195 = vunpack.c.l.b16 %v73
  %v196 = vunpack.c.l.b16 %v74
  %v197 = vunpack.c.l.b16 %v75
  %v198 = vunpack.c.l.b16 %v76
  %v199 = vunpack.c.l.b16 %v77
  %v200 = vpack.c.b16 %v196, %v195
  %v201 = vpack.c.b16 %v198, %v197
  %v202 = vpack.c.b16 %v199, %v199
  %vm203 = vcmask 195584
  %v205 = vsel %vm203, %v200, 0
  %v208 = vsel %vm203, %v201, 0
  %v211 = vsel %vm203, %v202, 0
  %v214 = vsel %vm135, %v116, 0
  %216 = vmatprep.subr.bf16.mxu0 0
  %217 = vmatpush1.bf16.msra.mxu0 %v115
  %218 = vmatprep.subr.bf16.mxu0 0
  %219 = vmatpush1.bf16.msra.mxu0 %v214
  %220 = vmatprep.subr.bf16.mxu0 0
  %221 = vmatpush1.bf16.msra.mxu0 0
  %222 = vmatprep.subr.bf16.mxu0 0
  %223 = vmatpush1.bf16.msra.mxu0 0
  %224 = vmatprep.subr.bf16.mxu0 0
  %225 = vmatpush1.bf16.msra.mxu0 0
  %226 = vmatprep.subr.bf16.mxu0 0
  %227 = vmatpush1.bf16.msra.mxu0 0
  %228 = vmatprep.subr.bf16.mxu0 0
  %229 = vmatpush1.bf16.msra.mxu0 0
  %230 = vmatprep.subr.bf16.mxu0 0
  %231 = vmatpush1.bf16.msra.mxu0 0
  %232 = vmatprep.subr.bf16.mxu0 0
  %233 = vmatpush1.bf16.msra.mxu0 0
  %234 = vmatprep.subr.bf16.mxu0 0
  %235 = vmatpush1.bf16.msra.mxu0 0
  %236 = vmatprep.subr.bf16.mxu0 0
  %237 = vmatpush1.bf16.msra.mxu0 0
  %238 = vmatprep.subr.bf16.mxu0 0
  %239 = vmatpush1.bf16.msra.mxu0 0
  %240 = vmatprep.subr.bf16.mxu0 0
  %241 = vmatpush1.bf16.msra.mxu0 0
  %242 = vmatprep.subr.bf16.mxu0 0
  %243 = vmatpush1.bf16.msra.mxu0 0
  %244 = vmatprep.subr.bf16.mxu0 0
  %245 = vmatpush1.bf16.msra.mxu0 0
  %246 = vmatprep.subr.bf16.mxu0 0
  %247 = vmatpush1.bf16.msra.mxu0 0
  %248 = vmatprep.mubr.bf16.mxu0 0
  %249 = vmatmul.mubr.bf16.gmra.mrb[0].mxu0 %v205
  %v250 = vpop.f32.mrb[0].mxu0
  %v251 = vadd.f32 0.0, %v250
  %v252 = vpop.f32.mrb[0].mxu0
  %v253 = vpop.f32.mrb[0].mxu0
  %v254 = vadd.f32 0.0, %v253
  %v255 = vpop.f32.mrb[0].mxu0
  %256 = vmatprep.mubr.bf16.mxu0 0
  %257 = vmatmul.mubr.bf16.gmra.mrb[0].mxu0 %v208
  %v258 = vpop.f32.mrb[0].mxu0
  %v259 = vadd.f32 0.0, %v258
  %v260 = vpop.f32.mrb[0].mxu0
  %v261 = vpop.f32.mrb[0].mxu0
  %v262 = vadd.f32 0.0, %v261
  %v263 = vpop.f32.mrb[0].mxu0
  %264 = vmatprep.mubr.bf16.mxu0 0
  %265 = vmatmul.mubr.bf16.gmra.mrb[0].mxu0 %v211
  %v266 = vpop.f32.mrb[0].mxu0
  %v267 = vadd.f32 0.0, %v266
  %v268 = vpop.f32.mrb[0].mxu0
  %v269 = vpop.f32.mrb[0].mxu0
  %v270 = vpop.f32.mrb[0].mxu0
  %271 = vdwg.mxu0
  %v272 = vmax.f32 %v251, 0.0
  %v273 = vmax.f32 %v254, 0.0
  %v274 = vmax.f32 %v259, 0.0
  %v275 = vmax.f32 %v262, 0.0
  %v276 = vmax.f32 %v267, 0.0
  %v277 = vsub.f32 %v78, %v83
  %v278 = vsub.f32 %v79, %v84
  %v279 = vmul.f32 %v103, %v277
  %v280 = vmul.f32 %v104, %v278
  %v281 = vadd.f32 %v83, %v279
  %v282 = vadd.f32 %v84, %v280
  %v283 = vsub.f32 %v83, %v78
  %v284 = vsub.f32 %v84, %v79
  %v285 = vmul.f32 %v105, %v283
  %v286 = vmul.f32 %v106, %v284
  %v287 = vadd.f32 %v78, %v285
  %v288 = vadd.f32 %v79, %v286
  %v289 = vsub.f32 %v80, %v187
  %v290 = vsub.f32 %v81, %v188
  %v291 = vsub.f32 %v82, %v189
  %v292 = vmul.f32 %v107, %v289
  %v293 = vmul.f32 %v108, %v290
  %v294 = vmul.f32 %v109, %v291
  %v295 = vadd.f32 %v187, %v292
  %v296 = vadd.f32 %v188, %v293
  %v297 = vadd.f32 %v189, %v294
  %v298 = vsub.f32 %v85, %v272
  %v299 = vsub.f32 %v86, %v273
  %v300 = vsub.f32 %v87, %v274
  %v301 = vsub.f32 %v88, %v275
  %v302 = vsub.f32 %v89, %v276
  %v303 = vmul.f32 %v110, %v298
  %v304 = vmul.f32 %v111, %v299
  %v305 = vmul.f32 %v112, %v300
  %v306 = vmul.f32 %v113, %v301
  %v307 = vmul.f32 %v114, %v302
  %v308 = vadd.f32 %v272, %v303
  %v309 = vadd.f32 %v273, %v304
  %v310 = vadd.f32 %v274, %v305
  %v311 = vadd.f32 %v275, %v306
  %v312 = vadd.f32 %v276, %v307
  %s313 = scalar_lea.vmem %s16, 16
  %314 = vst.msk [vmem:[%s313] sm:$0xff] %vm90, %v281
  %315 = vst.msk [vmem:[%s313 + $0x8] sm:$0xff] %vm90, %v282
  %s316 = scalar_lea.vmem %s18, 16
  %317 = vst.msk [vmem:[%s316] sm:$0xff] %vm90, %v287
  %318 = vst.msk [vmem:[%s316 + $0x8] sm:$0xff] %vm90, %v288
  %s319 = scalar_lea.vmem %s17, 24
  %320 = vst.msk [vmem:[%s319] sm:$0xff] %vm90, %v295
  %321 = vst.msk [vmem:[%s319 + $0x8] sm:$0xff] %vm90, %v296
  %322 = vst.msk [vmem:[%s319 + $0x10] sm:$0xff] %vm90, %v297
  %s323 = scalar_lea.vmem %s19, 40
  %324 = vst.msk [vmem:[%s323] sm:$0xff] %vm90, %v308
  %325 = vst.msk [vmem:[%s323 + $0x8] sm:$0xff] %vm90, %v309
  %326 = vst.msk [vmem:[%s323 + $0x10] sm:$0xff] %vm90, %v310
  %327 = vst.msk [vmem:[%s323 + $0x18] sm:$0xff] %vm90, %v311
  %328 = vst.msk [vmem:[%s323 + $0x20] sm:$0xff] %vm90, %v312
  %s329 = scalar_lea.vmem %s8, 16
  %v330 = vld [vmem:[%s329] sm:$0xf]
  %v331 = vld [vmem:[%s329 + $0x4] sm:$0xf]
  %v332 = vld [vmem:[%s329 + $0x8] sm:$0xf]
  %v333 = vld [vmem:[%s329 + $0xc] sm:$0xf]
  %s334 = scalar_lea.vmem %s9, 16
  %v335 = vld [vmem:[%s334] sm:$0xf]
  %v336 = vld [vmem:[%s334 + $0x4] sm:$0xf]
  %v337 = vld [vmem:[%s334 + $0x8] sm:$0xf]
  %v338 = vld [vmem:[%s334 + $0xc] sm:$0xf]
  %s339 = scalar_lea.vmem %s10, 1
  %v340 = vld [vmem:[%s339] sm:$0x1]
  %s341 = scalar_lea.vmem %s11, 1
  %v342 = vld [vmem:[%s341] sm:$0x1]
  %v343 = vpack.c.bf16 %v282, %v281
  %v344 = vpack.c.bf16 %v296, %v295
  %v345 = vpack.c.bf16 %v297, %v297
  %v346 = vpack.c.bf16 %v288, %v287
  %v347 = vpack.c.bf16 %v309, %v308
  %v348 = vpack.c.bf16 %v311, %v310
  %v349 = vpack.c.bf16 %v312, %v312
  %v355 = vunpack.c.l.b16 %v58
  %v356 = vunpack.c.l.b16 %v59
  %v357 = vunpack.c.l.b16 %v60
  %v358 = vunpack.c.l.b16 %v61
  %v359 = vunpack.c.l.b16 %v62
  %v360 = vpack.c.b16 %v356, %v355
  %v361 = vpack.c.b16 %v358, %v357
  %v362 = vpack.c.b16 %v359, %v359
  %v364 = vsel %vm128, %v360, 0
  %v367 = vsel %vm128, %v361, 0
  %v370 = vsel %vm128, %v362, 0
  %v373 = vsel %vm135, %v345, 0
  %375 = vmatprep.subr.bf16.mxu0 0
  %376 = vmatpush1.bf16.msra.mxu0 %v343
  %377 = vmatprep.subr.bf16.mxu0 0
  %378 = vmatpush1.bf16.msra.mxu0 %v344
  %379 = vmatprep.subr.bf16.mxu0 0
  %380 = vmatpush1.bf16.msra.mxu0 %v373
  %381 = vmatprep.subr.bf16.mxu0 0
  %382 = vmatpush1.bf16.msra.mxu0 0
  %383 = vmatprep.subr.bf16.mxu0 0
  %384 = vmatpush1.bf16.msra.mxu0 0
  %385 = vmatprep.subr.bf16.mxu0 0
  %386 = vmatpush1.bf16.msra.mxu0 0
  %387 = vmatprep.subr.bf16.mxu0 0
  %388 = vmatpush1.bf16.msra.mxu0 0
  %389 = vmatprep.subr.bf16.mxu0 0
  %390 = vmatpush1.bf16.msra.mxu0 0
  %391 = vmatprep.subr.bf16.mxu0 0
  %392 = vmatpush1.bf16.msra.mxu0 0
  %393 = vmatprep.subr.bf16.mxu0 0
  %394 = vmatpush1.bf16.msra.mxu0 0
  %395 = vmatprep.subr.bf16.mxu0 0
  %396 = vmatpush1.bf16.msra.mxu0 0
  %397 = vmatprep.subr.bf16.mxu0 0
  %398 = vmatpush1.bf16.msra.mxu0 0
  %399 = vmatprep.subr.bf16.mxu0 0
  %400 = vmatpush1.bf16.msra.mxu0 0
  %401 = vmatprep.subr.bf16.mxu0 0
  %402 = vmatpush1.bf16.msra.mxu0 0
  %403 = vmatprep.subr.bf16.mxu0 0
  %404 = vmatpush1.bf16.msra.mxu0 0
  %405 = vmatprep.subr.bf16.mxu0 0
  %406 = vmatpush1.bf16.msra.mxu0 0
  %407 = vmatprep.mubr.bf16.mxu0 0
  %408 = vmatmul.mubr.bf16.gmra.mrb[0].mxu0 %v364
  %v409 = vpop.f32.mrb[0].mxu0
  %v410 = vadd.f32 0.0, %v409
  %v411 = vpop.f32.mrb[0].mxu0
  %v412 = vpop.f32.mrb[0].mxu0
  %v413 = vadd.f32 0.0, %v412
  %v414 = vpop.f32.mrb[0].mxu0
  %415 = vmatprep.mubr.bf16.mxu0 0
  %416 = vmatmul.mubr.bf16.gmra.mrb[0].mxu0 %v367
  %v417 = vpop.f32.mrb[0].mxu0
  %v418 = vadd.f32 0.0, %v417
  %v419 = vpop.f32.mrb[0].mxu0
  %v420 = vpop.f32.mrb[0].mxu0
  %v421 = vadd.f32 0.0, %v420
  %v422 = vpop.f32.mrb[0].mxu0
  %423 = vmatprep.mubr.bf16.mxu0 0
  %424 = vmatmul.mubr.bf16.gmra.mrb[0].mxu0 %v370
  %v425 = vpop.f32.mrb[0].mxu0
  %v426 = vadd.f32 0.0, %v425
  %v427 = vpop.f32.mrb[0].mxu0
  %v428 = vpop.f32.mrb[0].mxu0
  %v429 = vpop.f32.mrb[0].mxu0
  %430 = vdwg.mxu0
  %v438 = vunpack.c.l.b16 %v63
  %v439 = vunpack.c.l.b16 %v64
  %v440 = vunpack.c.l.b16 %v65
  %v441 = vunpack.c.l.b16 %v66
  %v442 = vunpack.c.l.b16 %v67
  %v443 = vunpack.c.l.b16 %v68
  %v444 = vunpack.c.l.b16 %v69
  %v445 = vpack.c.b16 %v439, %v438
  %v446 = vpack.c.b16 %v441, %v440
  %v447 = vpack.c.b16 %v443, %v442
  %v448 = vpack.c.b16 %v444, %v444
  %vm449 = vcmask 457728
  %v451 = vsel %vm449, %v445, 0
  %v454 = vsel %vm449, %v446, 0
  %v457 = vsel %vm449, %v447, 0
  %v460 = vsel %vm449, %v448, 0
  %v463 = vsel %vm135, %v349, 0
  %465 = vmatprep.subr.bf16.mxu0 0
  %466 = vmatpush1.bf16.msra.mxu0 %v346
  %467 = vmatprep.subr.bf16.mxu0 0
  %468 = vmatpush1.bf16.msra.mxu0 %v347
  %469 = vmatprep.subr.bf16.mxu0 0
  %470 = vmatpush1.bf16.msra.mxu0 %v348
  %471 = vmatprep.subr.bf16.mxu0 0
  %472 = vmatpush1.bf16.msra.mxu0 %v463
  %473 = vmatprep.subr.bf16.mxu0 0
  %474 = vmatpush1.bf16.msra.mxu0 0
  %475 = vmatprep.subr.bf16.mxu0 0
  %476 = vmatpush1.bf16.msra.mxu0 0
  %477 = vmatprep.subr.bf16.mxu0 0
  %478 = vmatpush1.bf16.msra.mxu0 0
  %479 = vmatprep.subr.bf16.mxu0 0
  %480 = vmatpush1.bf16.msra.mxu0 0
  %481 = vmatprep.subr.bf16.mxu0 0
  %482 = vmatpush1.bf16.msra.mxu0 0
  %483 = vmatprep.subr.bf16.mxu0 0
  %484 = vmatpush1.bf16.msra.mxu0 0
  %485 = vmatprep.subr.bf16.mxu0 0
  %486 = vmatpush1.bf16.msra.mxu0 0
  %487 = vmatprep.subr.bf16.mxu0 0
  %488 = vmatpush1.bf16.msra.mxu0 0
  %489 = vmatprep.subr.bf16.mxu0 0
  %490 = vmatpush1.bf16.msra.mxu0 0
  %491 = vmatprep.subr.bf16.mxu0 0
  %492 = vmatpush1.bf16.msra.mxu0 0
  %493 = vmatprep.subr.bf16.mxu0 0
  %494 = vmatpush1.bf16.msra.mxu0 0
  %495 = vmatprep.subr.bf16.mxu0 0
  %496 = vmatpush1.bf16.msra.mxu0 0
  %497 = vmatprep.mubr.bf16.mxu0 0
  %498 = vmatmul.mubr.bf16.gmra.mrb[0].mxu0 %v451
  %v499 = vpop.f32.mrb[0].mxu0
  %v500 = vadd.f32 0.0, %v499
  %v501 = vpop.f32.mrb[0].mxu0
  %v502 = vpop.f32.mrb[0].mxu0
  %v503 = vadd.f32 0.0, %v502
  %v504 = vpop.f32.mrb[0].mxu0
  %505 = vmatprep.mubr.bf16.mxu0 0
  %506 = vmatmul.mubr.bf16.gmra.mrb[0].mxu0 %v454
  %v507 = vpop.f32.mrb[0].mxu0
  %v508 = vadd.f32 0.0, %v507
  %v509 = vpop.f32.mrb[0].mxu0
  %v510 = vpop.f32.mrb[0].mxu0
  %v511 = vadd.f32 0.0, %v510
  %v512 = vpop.f32.mrb[0].mxu0
  %513 = vmatprep.mubr.bf16.mxu0 0
  %514 = vmatmul.mubr.bf16.gmra.mrb[0].mxu0 %v457
  %v515 = vpop.f32.mrb[0].mxu0
  %v516 = vadd.f32 0.0, %v515
  %v517 = vpop.f32.mrb[0].mxu0
  %v518 = vpop.f32.mrb[0].mxu0
  %v519 = vadd.f32 0.0, %v518
  %v520 = vpop.f32.mrb[0].mxu0
  %521 = vmatprep.mubr.bf16.mxu0 0
  %522 = vmatmul.mubr.bf16.gmra.mrb[0].mxu0 %v460
  %v523 = vpop.f32.mrb[0].mxu0
  %v524 = vadd.f32 0.0, %v523
  %v525 = vpop.f32.mrb[0].mxu0
  %v526 = vpop.f32.mrb[0].mxu0
  %v527 = vpop.f32.mrb[0].mxu0
  %528 = vdwg.mxu0
  %v529 = vpack.c.bf16 %v413, %v410
  %v530 = vpack.c.bf16 %v421, %v418
  %v531 = vpack.c.bf16 %v426, %v426
  %v533 = vlaneseq
  %v534 = vshrl.u32 %v533, 7
  %v535 = vsub.s32 0, %v534
  %v536 = vrot.slane %v340, %v535
  %v542 = vunpack.c.l.b16 %v330
  %v543 = vunpack.c.l.b16 %v331
  %v544 = vunpack.c.l.b16 %v332
  %v545 = vunpack.c.l.b16 %v333
  %v546 = vpack.c.b16 %v543, %v542
  %v547 = vpack.c.b16 %v545, %v544
  %v551 = vsel %vm90, %v529, 0
  %v554 = vsel %vm90, %v530, 0
  %v557 = vsel %vm90, %v531, 0
  %559 = vmatprep.subr.bf16.mxu0 0
  %560 = vmatpush1.bf16.msra.mxu0 %v546
  %561 = vmatprep.subr.bf16.mxu0 0
  %562 = vmatpush1.bf16.msra.mxu0 %v547
  %563 = vmatprep.subr.bf16.mxu0 0
  %564 = vmatpush1.bf16.msra.mxu0 0
  %565 = vmatprep.subr.bf16.mxu0 0
  %566 = vmatpush1.bf16.msra.mxu0 0
  %567 = vmatprep.subr.bf16.mxu0 0
  %568 = vmatpush1.bf16.msra.mxu0 0
  %569 = vmatprep.subr.bf16.mxu0 0
  %570 = vmatpush1.bf16.msra.mxu0 0
  %571 = vmatprep.subr.bf16.mxu0 0
  %572 = vmatpush1.bf16.msra.mxu0 0
  %573 = vmatprep.subr.bf16.mxu0 0
  %574 = vmatpush1.bf16.msra.mxu0 0
  %575 = vmatprep.subr.bf16.mxu0 0
  %576 = vmatpush1.bf16.msra.mxu0 0
  %577 = vmatprep.subr.bf16.mxu0 0
  %578 = vmatpush1.bf16.msra.mxu0 0
  %579 = vmatprep.subr.bf16.mxu0 0
  %580 = vmatpush1.bf16.msra.mxu0 0
  %581 = vmatprep.subr.bf16.mxu0 0
  %582 = vmatpush1.bf16.msra.mxu0 0
  %583 = vmatprep.subr.bf16.mxu0 0
  %584 = vmatpush1.bf16.msra.mxu0 0
  %585 = vmatprep.subr.bf16.mxu0 0
  %586 = vmatpush1.bf16.msra.mxu0 0
  %587 = vmatprep.subr.bf16.mxu0 0
  %588 = vmatpush1.bf16.msra.mxu0 0
  %589 = vmatprep.subr.bf16.mxu0 0
  %590 = vmatpush1.bf16.msra.mxu0 0
  %591 = vmatprep.mubr.bf16.mxu0 0
  %592 = vmatmul.mubr.bf16.gmra.mrb[0].mxu0 %v551
  %v593 = vpop.f32.mrb[0].mxu0
  %v594 = vadd.f32 %v536, %v593
  %v595 = vpop.f32.mrb[0].mxu0
  %v596 = vpop.f32.mrb[0].mxu0
  %v597 = vadd.f32 %v536, %v596
  %v598 = vpop.f32.mrb[0].mxu0
  %599 = vmatprep.mubr.bf16.mxu0 0
  %600 = vmatmul.mubr.bf16.gmra.mrb[0].mxu0 %v554
  %v601 = vpop.f32.mrb[0].mxu0
  %v602 = vadd.f32 %v536, %v601
  %v603 = vpop.f32.mrb[0].mxu0
  %v604 = vpop.f32.mrb[0].mxu0
  %v605 = vadd.f32 %v536, %v604
  %v606 = vpop.f32.mrb[0].mxu0
  %607 = vmatprep.mubr.bf16.mxu0 0
  %608 = vmatmul.mubr.bf16.gmra.mrb[0].mxu0 %v557
  %v609 = vpop.f32.mrb[0].mxu0
  %v610 = vadd.f32 %v536, %v609
  %v611 = vpop.f32.mrb[0].mxu0
  %v612 = vpop.f32.mrb[0].mxu0
  %v613 = vpop.f32.mrb[0].mxu0
  %614 = vdwg.mxu0
  %v615 = vadd.f32 %v594, %v410
  %v616 = vadd.f32 %v597, %v413
  %v617 = vadd.f32 %v602, %v418
  %v618 = vadd.f32 %v605, %v421
  %v619 = vadd.f32 %v610, %v426
  %v620 = vmax.f32 %v615, 0.0
  %v621 = vmax.f32 %v616, 0.0
  %v622 = vmax.f32 %v617, 0.0
  %v623 = vmax.f32 %v618, 0.0
  %v624 = vmax.f32 %v619, 0.0
  %v625 = vpack.c.bf16 %v503, %v500
  %v626 = vpack.c.bf16 %v511, %v508
  %v627 = vpack.c.bf16 %v519, %v516
  %v628 = vpack.c.bf16 %v524, %v524
  %v630 = vlaneseq
  %v631 = vshrl.u32 %v630, 7
  %v632 = vsub.s32 0, %v631
  %v633 = vrot.slane %v342, %v632
  %v639 = vunpack.c.l.b16 %v335
  %v640 = vunpack.c.l.b16 %v336
  %v641 = vunpack.c.l.b16 %v337
  %v642 = vunpack.c.l.b16 %v338
  %v643 = vpack.c.b16 %v640, %v639
  %v644 = vpack.c.b16 %v642, %v641
  %v648 = vsel %vm90, %v625, 0
  %v651 = vsel %vm90, %v626, 0
  %v654 = vsel %vm90, %v627, 0
  %v657 = vsel %vm90, %v628, 0
  %659 = vmatprep.subr.bf16.mxu0 0
  %660 = vmatpush1.bf16.msra.mxu0 %v643
  %661 = vmatprep.subr.bf16.mxu0 0
  %662 = vmatpush1.bf16.msra.mxu0 %v644
  %663 = vmatprep.subr.bf16.mxu0 0
  %664 = vmatpush1.bf16.msra.mxu0 0
  %665 = vmatprep.subr.bf16.mxu0 0
  %666 = vmatpush1.bf16.msra.mxu0 0
  %667 = vmatprep.subr.bf16.mxu0 0
  %668 = vmatpush1.bf16.msra.mxu0 0
  %669 = vmatprep.subr.bf16.mxu0 0
  %670 = vmatpush1.bf16.msra.mxu0 0
  %671 = vmatprep.subr.bf16.mxu0 0
  %672 = vmatpush1.bf16.msra.mxu0 0
  %673 = vmatprep.subr.bf16.mxu0 0
  %674 = vmatpush1.bf16.msra.mxu0 0
  %675 = vmatprep.subr.bf16.mxu0 0
  %676 = vmatpush1.bf16.msra.mxu0 0
  %677 = vmatprep.subr.bf16.mxu0 0
  %678 = vmatpush1.bf16.msra.mxu0 0
  %679 = vmatprep.subr.bf16.mxu0 0
  %680 = vmatpush1.bf16.msra.mxu0 0
  %681 = vmatprep.subr.bf16.mxu0 0
  %682 = vmatpush1.bf16.msra.mxu0 0
  %683 = vmatprep.subr.bf16.mxu0 0
  %684 = vmatpush1.bf16.msra.mxu0 0
  %685 = vmatprep.subr.bf16.mxu0 0
  %686 = vmatpush1.bf16.msra.mxu0 0
  %687 = vmatprep.subr.bf16.mxu0 0
  %688 = vmatpush1.bf16.msra.mxu0 0
  %689 = vmatprep.subr.bf16.mxu0 0
  %690 = vmatpush1.bf16.msra.mxu0 0
  %691 = vmatprep.mubr.bf16.mxu0 0
  %692 = vmatmul.mubr.bf16.gmra.mrb[0].mxu0 %v648
  %v693 = vpop.f32.mrb[0].mxu0
  %v694 = vadd.f32 %v633, %v693
  %v695 = vpop.f32.mrb[0].mxu0
  %v696 = vpop.f32.mrb[0].mxu0
  %v697 = vadd.f32 %v633, %v696
  %v698 = vpop.f32.mrb[0].mxu0
  %699 = vmatprep.mubr.bf16.mxu0 0
  %700 = vmatmul.mubr.bf16.gmra.mrb[0].mxu0 %v651
  %v701 = vpop.f32.mrb[0].mxu0
  %v702 = vadd.f32 %v633, %v701
  %v703 = vpop.f32.mrb[0].mxu0
  %v704 = vpop.f32.mrb[0].mxu0
  %v705 = vadd.f32 %v633, %v704
  %v706 = vpop.f32.mrb[0].mxu0
  %707 = vmatprep.mubr.bf16.mxu0 0
  %708 = vmatmul.mubr.bf16.gmra.mrb[0].mxu0 %v654
  %v709 = vpop.f32.mrb[0].mxu0
  %v710 = vadd.f32 %v633, %v709
  %v711 = vpop.f32.mrb[0].mxu0
  %v712 = vpop.f32.mrb[0].mxu0
  %v713 = vadd.f32 %v633, %v712
  %v714 = vpop.f32.mrb[0].mxu0
  %715 = vmatprep.mubr.bf16.mxu0 0
  %716 = vmatmul.mubr.bf16.gmra.mrb[0].mxu0 %v657
  %v717 = vpop.f32.mrb[0].mxu0
  %v718 = vadd.f32 %v633, %v717
  %v719 = vpop.f32.mrb[0].mxu0
  %v720 = vpop.f32.mrb[0].mxu0
  %v721 = vpop.f32.mrb[0].mxu0
  %722 = vdwg.mxu0
  %v723 = vadd.f32 %v694, %v500
  %v724 = vadd.f32 %v697, %v503
  %v725 = vadd.f32 %v702, %v508
  %v726 = vadd.f32 %v705, %v511
  %v727 = vadd.f32 %v710, %v516
  %v728 = vadd.f32 %v713, %v519
  %v729 = vadd.f32 %v718, %v524
  %v730 = vmax.f32 %v723, 0.0
  %v731 = vmax.f32 %v724, 0.0
  %v732 = vmax.f32 %v725, 0.0
  %v733 = vmax.f32 %v726, 0.0
  %v734 = vmax.f32 %v727, 0.0
  %v735 = vmax.f32 %v728, 0.0
  %v736 = vmax.f32 %v729, 0.0
  %s737 = scalar_lea.vmem %s12, 16
  %v738 = vld [vmem:[%s737] sm:$0xff]
  %v739 = vld [vmem:[%s737 + $0x8] sm:$0xff]
  %s740 = scalar_lea.vmem %s13, 16
  %v741 = vld [vmem:[%s740] sm:$0xff]
  %v742 = vld [vmem:[%s740 + $0x8] sm:$0xff]
  %s743 = scalar_lea.vmem %s14, 24
  %v744 = vld [vmem:[%s743] sm:$0xff]
  %v745 = vld [vmem:[%s743 + $0x8] sm:$0xff]
  %v746 = vld [vmem:[%s743 + $0x10] sm:$0xff]
  %s747 = scalar_lea.vmem %s15, 40
  %v748 = vld [vmem:[%s747] sm:$0xff]
  %v749 = vld [vmem:[%s747 + $0x8] sm:$0xff]
  %v750 = vld [vmem:[%s747 + $0x10] sm:$0xff]
  %v751 = vld [vmem:[%s747 + $0x18] sm:$0xff]
  %v752 = vld [vmem:[%s747 + $0x20] sm:$0xff]
  %v753 = vpack.c.bf16 %v623, %v622
  %v754 = vpack.c.bf16 %v624, %v624
  %v755 = vpack.c.bf16 %v733, %v732
  %v756 = vpack.c.bf16 %v735, %v734
  %v757 = vpack.c.bf16 %v736, %v736
  %v759 = vsel %vm135, %v757, 0
  %761 = vmatprep.subr.bf16.mxu0 0
  %762 = vmatpush1.bf16.msra.mxu0 %v755
  %763 = vmatprep.subr.bf16.mxu0 0
  %764 = vmatpush1.bf16.msra.mxu0 %v756
  %765 = vmatprep.subr.bf16.mxu0 0
  %766 = vmatpush1.bf16.msra.mxu0 %v759
  %767 = vmatprep.subr.bf16.mxu0 0
  %768 = vmatpush1.bf16.msra.mxu0 0
  %769 = vmatprep.subr.bf16.mxu0 0
  %770 = vmatpush1.bf16.msra.mxu0 0
  %771 = vmatprep.subr.bf16.mxu0 0
  %772 = vmatpush1.bf16.msra.mxu0 0
  %773 = vmatprep.subr.bf16.mxu0 0
  %774 = vmatpush1.bf16.msra.mxu0 0
  %775 = vmatprep.subr.bf16.mxu0 0
  %776 = vmatpush1.bf16.msra.mxu0 0
  %777 = vmatprep.subr.bf16.mxu0 0
  %778 = vmatpush1.bf16.msra.mxu0 0
  %779 = vmatprep.subr.bf16.mxu0 0
  %780 = vmatpush1.bf16.msra.mxu0 0
  %781 = vmatprep.subr.bf16.mxu0 0
  %782 = vmatpush1.bf16.msra.mxu0 0
  %783 = vmatprep.subr.bf16.mxu0 0
  %784 = vmatpush1.bf16.msra.mxu0 0
  %785 = vmatprep.subr.bf16.mxu0 0
  %786 = vmatpush1.bf16.msra.mxu0 0
  %787 = vmatprep.subr.bf16.mxu0 0
  %788 = vmatpush1.bf16.msra.mxu0 0
  %789 = vmatprep.subr.bf16.mxu0 0
  %790 = vmatpush1.bf16.msra.mxu0 0
  %791 = vmatprep.subr.bf16.mxu0 0
  %792 = vmatpush1.bf16.msra.mxu0 0
  %793 = vmatprep.mubr.bf16.mxu0 0
  %794 = vmatmul.mubr.bf16.gmra.mrb[0].mxu0 %v130
  %v795 = vpop.f32.mrb[0].mxu0
  %v796 = vadd.f32 0.0, %v795
  %v797 = vpop.f32.mrb[0].mxu0
  %v798 = vpop.f32.mrb[0].mxu0
  %v799 = vadd.f32 0.0, %v798
  %v800 = vpop.f32.mrb[0].mxu0
  %801 = vmatprep.mubr.bf16.mxu0 0
  %802 = vmatmul.mubr.bf16.gmra.mrb[0].mxu0 %v133
  %v803 = vpop.f32.mrb[0].mxu0
  %v804 = vadd.f32 0.0, %v803
  %v805 = vpop.f32.mrb[0].mxu0
  %v806 = vpop.f32.mrb[0].mxu0
  %v807 = vpop.f32.mrb[0].mxu0
  %808 = vdwg.mxu0
  %v809 = vmax.f32 %v796, 0.0
  %v810 = vmax.f32 %v799, 0.0
  %v811 = vmax.f32 %v804, 0.0
  %v813 = vsel %vm135, %v754, 0
  %815 = vmatprep.subr.bf16.mxu0 0
  %816 = vmatpush1.bf16.msra.mxu0 %v753
  %817 = vmatprep.subr.bf16.mxu0 0
  %818 = vmatpush1.bf16.msra.mxu0 %v813
  %819 = vmatprep.subr.bf16.mxu0 0
  %820 = vmatpush1.bf16.msra.mxu0 0
  %821 = vmatprep.subr.bf16.mxu0 0
  %822 = vmatpush1.bf16.msra.mxu0 0
  %823 = vmatprep.subr.bf16.mxu0 0
  %824 = vmatpush1.bf16.msra.mxu0 0
  %825 = vmatprep.subr.bf16.mxu0 0
  %826 = vmatpush1.bf16.msra.mxu0 0
  %827 = vmatprep.subr.bf16.mxu0 0
  %828 = vmatpush1.bf16.msra.mxu0 0
  %829 = vmatprep.subr.bf16.mxu0 0
  %830 = vmatpush1.bf16.msra.mxu0 0
  %831 = vmatprep.subr.bf16.mxu0 0
  %832 = vmatpush1.bf16.msra.mxu0 0
  %833 = vmatprep.subr.bf16.mxu0 0
  %834 = vmatpush1.bf16.msra.mxu0 0
  %835 = vmatprep.subr.bf16.mxu0 0
  %836 = vmatpush1.bf16.msra.mxu0 0
  %837 = vmatprep.subr.bf16.mxu0 0
  %838 = vmatpush1.bf16.msra.mxu0 0
  %839 = vmatprep.subr.bf16.mxu0 0
  %840 = vmatpush1.bf16.msra.mxu0 0
  %841 = vmatprep.subr.bf16.mxu0 0
  %842 = vmatpush1.bf16.msra.mxu0 0
  %843 = vmatprep.subr.bf16.mxu0 0
  %844 = vmatpush1.bf16.msra.mxu0 0
  %845 = vmatprep.subr.bf16.mxu0 0
  %846 = vmatpush1.bf16.msra.mxu0 0
  %847 = vmatprep.mubr.bf16.mxu0 0
  %848 = vmatmul.mubr.bf16.gmra.mrb[0].mxu0 %v205
  %v849 = vpop.f32.mrb[0].mxu0
  %v850 = vadd.f32 0.0, %v849
  %v851 = vpop.f32.mrb[0].mxu0
  %v852 = vpop.f32.mrb[0].mxu0
  %v853 = vadd.f32 0.0, %v852
  %v854 = vpop.f32.mrb[0].mxu0
  %855 = vmatprep.mubr.bf16.mxu0 0
  %856 = vmatmul.mubr.bf16.gmra.mrb[0].mxu0 %v208
  %v857 = vpop.f32.mrb[0].mxu0
  %v858 = vadd.f32 0.0, %v857
  %v859 = vpop.f32.mrb[0].mxu0
  %v860 = vpop.f32.mrb[0].mxu0
  %v861 = vadd.f32 0.0, %v860
  %v862 = vpop.f32.mrb[0].mxu0
  %863 = vmatprep.mubr.bf16.mxu0 0
  %864 = vmatmul.mubr.bf16.gmra.mrb[0].mxu0 %v211
  %v865 = vpop.f32.mrb[0].mxu0
  %v866 = vadd.f32 0.0, %v865
  %v867 = vpop.f32.mrb[0].mxu0
  %v868 = vpop.f32.mrb[0].mxu0
  %v869 = vpop.f32.mrb[0].mxu0
  %870 = vdwg.mxu0
  %v871 = vmax.f32 %v850, 0.0
  %v872 = vmax.f32 %v853, 0.0
  %v873 = vmax.f32 %v858, 0.0
  %v874 = vmax.f32 %v861, 0.0
  %v875 = vmax.f32 %v866, 0.0
  %v876 = vsub.f32 %v620, %v730
  %v877 = vsub.f32 %v621, %v731
  %v878 = vmul.f32 %v738, %v876
  %v879 = vmul.f32 %v739, %v877
  %v880 = vadd.f32 %v730, %v878
  %v881 = vadd.f32 %v731, %v879
  %v882 = vsub.f32 %v730, %v620
  %v883 = vsub.f32 %v731, %v621
  %v884 = vmul.f32 %v741, %v882
  %v885 = vmul.f32 %v742, %v883
  %v886 = vadd.f32 %v620, %v884
  %v887 = vadd.f32 %v621, %v885
  %v888 = vsub.f32 %v622, %v809
  %v889 = vsub.f32 %v623, %v810
  %v890 = vsub.f32 %v624, %v811
  %v891 = vmul.f32 %v744, %v888
  %v892 = vmul.f32 %v745, %v889
  %v893 = vmul.f32 %v746, %v890
  %v894 = vadd.f32 %v809, %v891
  %v895 = vadd.f32 %v810, %v892
  %v896 = vadd.f32 %v811, %v893
  %v897 = vsub.f32 %v732, %v871
  %v898 = vsub.f32 %v733, %v872
  %v899 = vsub.f32 %v734, %v873
  %v900 = vsub.f32 %v735, %v874
  %v901 = vsub.f32 %v736, %v875
  %v902 = vmul.f32 %v748, %v897
  %v903 = vmul.f32 %v749, %v898
  %v904 = vmul.f32 %v750, %v899
  %v905 = vmul.f32 %v751, %v900
  %v906 = vmul.f32 %v752, %v901
  %v907 = vadd.f32 %v871, %v902
  %v908 = vadd.f32 %v872, %v903
  %v909 = vadd.f32 %v873, %v904
  %v910 = vadd.f32 %v874, %v905
  %v911 = vadd.f32 %v875, %v906
  %s912 = scalar_lea.vmem %s16, 32
  %913 = vst.msk [vmem:[%s912] sm:$0xff] %vm90, %v880
  %914 = vst.msk [vmem:[%s912 + $0x8] sm:$0xff] %vm90, %v881
  %s915 = scalar_lea.vmem %s18, 32
  %916 = vst.msk [vmem:[%s915] sm:$0xff] %vm90, %v886
  %917 = vst.msk [vmem:[%s915 + $0x8] sm:$0xff] %vm90, %v887
  %s918 = scalar_lea.vmem %s17, 48
  %919 = vst.msk [vmem:[%s918] sm:$0xff] %vm90, %v894
  %920 = vst.msk [vmem:[%s918 + $0x8] sm:$0xff] %vm90, %v895
  %921 = vst.msk [vmem:[%s918 + $0x10] sm:$0xff] %vm90, %v896
  %s922 = scalar_lea.vmem %s19, 80
  %923 = vst.msk [vmem:[%s922] sm:$0xff] %vm90, %v907
  %924 = vst.msk [vmem:[%s922 + $0x8] sm:$0xff] %vm90, %v908
  %925 = vst.msk [vmem:[%s922 + $0x10] sm:$0xff] %vm90, %v909
  %926 = vst.msk [vmem:[%s922 + $0x18] sm:$0xff] %vm90, %v910
  %927 = vst.msk [vmem:[%s922 + $0x20] sm:$0xff] %vm90, %v911
  // Predicated region
  $region66: #{ii_hgcn_forward.1} parent=0 // pred_check
    _
  $region67: #{ii_hgcn_forward.1} parent=0 // pred_check_branch
    %929 = sbr.rel (0) target = $region69
  $region68: #{ii_hgcn_forward.1} parent=0 // pred_region
    _
  $region69: #{ii_hgcn_forward.1} parent=0 // pred_fallthru
    _
  // Predicated region
  $region70: #{ii_hgcn_forward.1} parent=0 // pred_check
    _
  $region71: #{ii_hgcn_forward.1} parent=0 // pred_check_branch
    %931 = sbr.rel (0) target = $region73
  $region72: #{ii_hgcn_forward.1} parent=0 // pred_region
    _
  $region73: #{ii_hgcn_forward.1} parent=0 // pred_fallthru
    _
  // Predicated region
  $region74: #{ii_hgcn_forward.1} parent=0 // pred_check
    _
  $region75: #{ii_hgcn_forward.1} parent=0 // pred_check_branch
    %933 = sbr.rel (0) target = $region77
  $region76: #{ii_hgcn_forward.1} parent=0 // pred_region
    _
  $region77: #{ii_hgcn_forward.1} parent=0 // pred_fallthru
    _
  // Predicated region
  $region78: #{ii_hgcn_forward.1} parent=0 // pred_check
    _
  $region79: #{ii_hgcn_forward.1} parent=0 // pred_check_branch
    %935 = sbr.rel (0) target = $region81
  $region80: #{ii_hgcn_forward.1} parent=0 // pred_region
    _
  $region81: #{ii_hgcn_forward.1} parent=0 // pred_fallthru
    _
  // Predicated region
  $region82: #{ii_hgcn_forward.1} parent=0 // pred_check
    _
  $region83: #{ii_hgcn_forward.1} parent=0 // pred_check_branch
    %937 = sbr.rel (0) target = $region85
  $region84: #{ii_hgcn_forward.1} parent=0 // pred_region
    _
  $region85: #{ii_hgcn_forward.1} parent=0 // pred_fallthru
    _
  // Predicated region
  $region86: #{ii_hgcn_forward.1} parent=0 // pred_check
    _
  $region87: #{ii_hgcn_forward.1} parent=0 // pred_check_branch
    %939 = sbr.rel (0) target = $region89
  $region88: #{ii_hgcn_forward.1} parent=0 // pred_region
    _
  $region89: #{ii_hgcn_forward.1} parent=0 // pred_fallthru
    _
  // Predicated region
  $region90: #{ii_hgcn_forward.1} parent=0 // pred_check
    _
  $region91: #{ii_hgcn_forward.1} parent=0 // pred_check_branch
    %941 = sbr.rel (0) target = $region93
  $region92: #{ii_hgcn_forward.1} parent=0 // pred_region
    _
  $region93: #{ii_hgcn_forward.1} parent=0 // pred_fallthru
    _
  // Predicated region
  $region94: #{ii_hgcn_forward.1} parent=0 // pred_check
    _
  $region95: #{ii_hgcn_forward.1} parent=0 // pred_check_branch
    %943 = sbr.rel (0) target = $region97
  $region96: #{ii_hgcn_forward.1} parent=0 // pred_region
    _
  $region97: #{ii_hgcn_forward.1} parent=0 // pred_fallthru
    _

</llo_original>
